<compile_context>
chip_gen: v5e
topology: v5e:2x2
jax: 0.10.0
libtpu: 0.0.40
codegen_flags: <defaults>
</compile_context>

<pallas_src>
import numpy as np
import jax
import jax.numpy as jnp
from jax.experimental import pallas as pl
from jax.experimental.pallas import tpu as pltpu


# ----------------------------------------------------------------------------
# Fused Pallas kernel (built from a static configuration)
# ----------------------------------------------------------------------------

def make_fused_kernel(B, K, verts, channels):
    """channels[lvl] = list of (Cin, Cout) for each ChebConv block at that level."""
    n_levels = len(channels)
    n_conv = sum(len(c) for c in channels)

    def kernel(*refs):
        it = iter(refs)
        # ---- inputs ---------------------------------------------------------
        x_ref = next(it)                                           # (B*V0, C0)
        levels = []
        for lvl in range(n_levels):
            l_ref = next(it)                                       # (V_l, V_l)
            blocks = [(next(it), next(it)) for _ in channels[lvl]]  # (K*Cin,Cout),(1,Cout)
            d_ref = next(it)                                       # (V_{l+1}, V_l)
            levels.append((l_ref, blocks, d_ref))
        lin_w_ref, lin_b_ref = next(it), next(it)                  # (F, hidden), (1, hidden)
        mw_ref, mb_ref = next(it), next(it)                        # (hidden, out), (1, out)
        vw_ref, vb_ref = next(it), next(it)                        # (hidden, out), (1, out)
        # ---- outputs --------------------------------------------------------
        mean_ref, std_ref = next(it), next(it)                     # (B, out) each
        # ---- scratch --------------------------------------------------------
        tcat_refs = [next(it) for _ in range(n_conv)]              # (B*V_l, K*Cin) each
        h_ref = next(it)                                           # (B, V_last*C_last)

        f32 = jnp.float32
        V0 = verts[0]
        xs = [x_ref[b * V0:(b + 1) * V0, :] for b in range(B)]     # per-batch (V, C)

        tci = 0
        for lvl in range(n_levels):
            l_ref, blocks, d_ref = levels[lvl]
            V = verts[lvl]
            L = l_ref[...]
            X = None
            for (w_ref, b_ref), (Cin, Cout) in zip(blocks, channels[lvl]):
                tcat = tcat_refs[tci]
                tci += 1
                # Chebyshev recursion; T_k terms land in the VMEM scratch slab so the
                # K weight matmuls collapse into a single MXU matmul below.
                for b in range(B):
                    r0, r1 = b * V, (b + 1) * V
                    t_prev = xs[b]                                               # T_0
                    tcat[r0:r1, 0:Cin] = t_prev
                    if K > 1:
                        t_cur = jnp.dot(L, t_prev, preferred_element_type=f32)   # T_1
                        tcat[r0:r1, Cin:2 * Cin] = t_cur
                        for k in range(2, K):
                            t_nxt = (2.0 * jnp.dot(L, t_cur,
                                                   preferred_element_type=f32)
                                     - t_prev)                                   # T_k
                            tcat[r0:r1, k * Cin:(k + 1) * Cin] = t_nxt
                            t_prev, t_cur = t_cur, t_nxt
                # one collapsed (B*V, K*Cin) @ (K*Cin, Cout) matmul + bias
                X = (jnp.dot(tcat[...], w_ref[...], preferred_element_type=f32)
                     + b_ref[...])
                xs = [X[b * V:(b + 1) * V, :] for b in range(B)]
            # ELU (alpha=1) then Pool (dense down-transform matmul).
            # TODO(synk): jnp.expm1 would be marginally more accurate near 0; exp-1
            #             matches the torch/JAX reference exactly and is within tol.
            E = jnp.where(X > 0, X, jnp.exp(jnp.minimum(X, 0.0)) - 1.0)
            Dm = d_ref[...]
            xs = [jnp.dot(Dm, E[b * V:(b + 1) * V, :], preferred_element_type=f32)
                  for b in range(B)]

        # flatten to (B, V_last*C_last) (torch x.reshape(B, -1) order) in VMEM scratch;
        # the resulting rows are lane-dense (128 wide) for the backbone Linear matmul.
        V_last = verts[n_levels]
        C_last = channels[-1][-1][1]
        for b in range(B):
            for v in range(V_last):
                h_ref[b:b + 1, v * C_last:(v + 1) * C_last] = xs[b][v:v + 1, :]

        hdn = (jnp.dot(h_ref[...], lin_w_ref[...], preferred_element_type=f32)
               + lin_b_ref[...])
        mean = jnp.dot(hdn, mw_ref[...], preferred_element_type=f32) + mb_ref[...]
        logvar = jnp.dot(hdn, vw_ref[...], preferred_element_type=f32) + vb_ref[...]
        mean_ref[...] = mean
        std_ref[...] = jnp.exp(0.5 * logvar)

    return kernel


# ----------------------------------------------------------------------------
# Wrapper: host-side layout plumbing + single pallas_call
# ----------------------------------------------------------------------------

def _full_spec(shape):
    nd = len(shape)
    return pl.BlockSpec(shape, lambda i: (0,) * nd)


def deep_indep_normal_forward(x, params, *, K, verts, channels, hidden_dim, out_dim):
    B = x.shape[0]
    n_levels = len(channels)
    V0, C0 = verts[0], channels[0][0][0]
    F = verts[n_levels] * channels[-1][-1][1]

    inputs, in_specs, scratch = [], [], []

    def add(arr):
        inputs.append(arr)
        in_specs.append(_full_spec(arr.shape))

    add(x.reshape(B * V0, C0))                        # row-batched activations (free reshape)
    for lvl in range(n_levels):
        add(params["L"][lvl])
        for (w, b), (Cin, Cout) in zip(params["cheb"][lvl], channels[lvl]):
            add(w.reshape(K * Cin, Cout))             # collapse the K weight matmuls
            add(b.reshape(1, Cout))
            scratch.append(pltpu.VMEM((B * verts[lvl], K * Cin), jnp.float32))
        add(params["D"][lvl])
    add(params["lin_w"].T)                            # (F, hidden)   host-side transpose
    add(params["lin_b"].reshape(1, hidden_dim))
    add(params["mean_w"].T)                           # (hidden, out) host-side transpose
    add(params["mean_b"].reshape(1, out_dim))
    add(params["logvar_w"].T)
    add(params["logvar_b"].reshape(1, out_dim))
    scratch.append(pltpu.VMEM((B, F), jnp.float32))   # flattened backbone features

    kernel = make_fused_kernel(B, K, verts, channels)
    mean, std = pl.pallas_call(
        kernel,
        out_shape=(jax.ShapeDtypeStruct((B, out_dim), jnp.float32),
                   jax.ShapeDtypeStruct((B, out_dim), jnp.float32)),
        grid=(1,),
        in_specs=in_specs,
        out_specs=(_full_spec((B, out_dim)), _full_spec((B, out_dim))),
        scratch_shapes=tuple(scratch),
        compiler_params=pltpu.CompilerParams(
            dimension_semantics=("arbitrary",),
            vmem_limit_bytes=32 * 1024 * 1024,
        ),
    )(*inputs)
    return mean, std


# ----------------------------------------------------------------------------
# Graph / parameter construction (deterministic plain numpy / JAX glue)
# ----------------------------------------------------------------------------

def ring_edge_index(V):
    src = np.arange(V)
    dst = (src + 1) % V
    return np.stack([np.concatenate([src, dst]), np.concatenate([dst, src])], axis=0)


def scaled_laplacian_dense(edge_index, V, lambda_max=2.0):
    # PyG ChebConv (sym norm): L_hat = (2/lambda_max)*(I - D^-1/2 A D^-1/2) - I
    A = np.zeros((V, V), dtype=np.float32)
    A[edge_index[0], edge_index[1]] = 1.0
    deg = A.sum(axis=1)
    dinv = np.where(deg > 0, 1.0 / np.sqrt(np.maximum(deg, 1e-12)), 0.0)
    L = np.eye(V, dtype=np.float32) - dinv[:, None] * A * dinv[None, :]
    return ((2.0 / lambda_max) * L - np.eye(V, dtype=np.float32)).astype(np.float32)


def down_transform_dense(Vout, Vin):
    # dense stand-in for the sparse down_transform: average pairs of vertices
    D = np.zeros((Vout, Vin), dtype=np.float32)
    for r in range(Vout):
        D[r, (2 * r) % Vin] = 0.5
        D[r, (2 * r + 1) % Vin] = 0.5
    return D


def xavier_uniform(key, shape):
    if len(shape) == 2:
        fan_in, fan_out = shape[1], shape[0]
    else:  # (K, Cin, Cout)
        rf = int(np.prod(shape[2:]))
        fan_in, fan_out = shape[1] * rf, shape[0] * rf
    bound = float(np.sqrt(6.0 / (fan_in + fan_out)))
    return jax.random.uniform(key, shape, jnp.float32, -bound, bound)


# ----------------------------------------------------------------------------
# Pure-JAX reference (correctness check)
# ----------------------------------------------------------------------------

def ref_forward(x, params):
    xx = x
    for L, D, blocks in zip(params["L"], params["D"], params["cheb"]):
        for (w, b) in blocks:
            K = w.shape[0]
            Tx0 = xx
            out = Tx0 @ w[0]
            if K > 1:
                Tx1 = jnp.einsum("vu,buc->bvc", L, Tx0)
                out = out + Tx1 @ w[1]
                for k in range(2, K):
                    Tx2 = 2.0 * jnp.einsum("vu,buc->bvc", L, Tx1) - Tx0
                    out = out + Tx2 @ w[k]
                    Tx0, Tx1 = Tx1, Tx2
            xx = out + b
        xx = jnp.where(xx > 0, xx, jnp.exp(xx) - 1.0)
        xx = jnp.einsum("ov,bvc->boc", D, xx)
    h = xx.reshape(xx.shape[0], -1)
    hdn = h @ params["lin_w"].T + params["lin_b"]
    mean = hdn @ params["mean_w"].T + params["mean_b"]
    logvar = hdn @ params["logvar_w"].T + params["logvar_b"]
    return mean, jnp.exp(0.5 * logvar)


# ----------------------------------------------------------------------------

if __name__ == "__main__":
    B = 2
    in_channels = 3
    out_channels = [16, 16]
    hidden_dim = 8            # backbone (encoder) output dim == DeepIndepNormal hidden_dim
    out_dim = 4               # DeepIndepNormal out_dim
    K = 3
    n_blocks = 1
    verts = [32, 16, 8]       # vertices per mesh level

    channels = []
    for idx in range(len(out_channels)):
        blocks = []
        for blk in range(n_blocks):
            cin = (in_channels if idx == 0 else out_channels[idx - 1]) if blk == 0 \
                else out_channels[idx]
            blocks.append((cin, out_channels[idx]))
        channels.append(blocks)

    params = {
        "L": [jnp.asarray(scaled_laplacian_dense(ring_edge_index(verts[i]), verts[i]))
              for i in range(len(out_channels))],
        "D": [jnp.asarray(down_transform_dense(verts[i + 1], verts[i]))
              for i in range(len(out_channels))],
    }

    key = jax.random.PRNGKey(0)
    cheb = []
    for lvl in range(len(out_channels)):
        blocks = []
        for (cin, cout) in channels[lvl]:
            key, wk, bk = jax.random.split(key, 3)
            blocks.append((xavier_uniform(wk, (K, cin, cout)),
                           0.1 * jax.random.normal(bk, (cout,), jnp.float32)))
        cheb.append(blocks)
    params["cheb"] = cheb

    F = verts[-1] * out_channels[-1]
    key, k1, k2, k3, k4, k5, k6 = jax.random.split(key, 7)
    params["lin_w"] = xavier_uniform(k1, (hidden_dim, F))          # torch layout [out, in]
    params["lin_b"] = 0.1 * jax.random.normal(k2, (hidden_dim,), jnp.float32)
    params["mean_w"] = xavier_uniform(k3, (out_dim, hidden_dim))
    params["mean_b"] = 0.1 * jax.random.normal(k4, (out_dim,), jnp.float32)
    params["logvar_w"] = xavier_uniform(k5, (out_dim, hidden_dim))
    params["logvar_b"] = 0.1 * jax.random.normal(k6, (out_dim,), jnp.float32)

    key, xk = jax.random.split(key)
    x = jax.random.normal(xk, (B, verts[0], in_channels), jnp.float32)

    mean, std = deep_indep_normal_forward(
        x, params, K=K, verts=verts, channels=channels,
        hidden_dim=hidden_dim, out_dim=out_dim)
    mean, std = jax.block_until_ready((mean, std))

    ref_mean, ref_std = ref_forward(x, params)
    np.testing.assert_allclose(np.asarray(mean), np.asarray(ref_mean),
                               rtol=1e-4, atol=1e-4)
    np.testing.assert_allclose(np.asarray(std), np.asarray(ref_std),
                               rtol=1e-4, atol=1e-4)
    assert mean.shape == (B, out_dim) and std.shape == (B, out_dim)

    print("KERNEL_OK")
</pallas_src>

<mosaic_0001>
module attributes {stable_mosaic.version = 11 : i64} {
  func.func @kernel(%arg0: i32, %arg1: memref<64x3xf32, #tpu.memory_space<vmem>>, %arg2: memref<32x32xf32, #tpu.memory_space<vmem>>, %arg3: memref<9x16xf32, #tpu.memory_space<vmem>>, %arg4: memref<1x16xf32, #tpu.memory_space<vmem>>, %arg5: memref<16x32xf32, #tpu.memory_space<vmem>>, %arg6: memref<16x16xf32, #tpu.memory_space<vmem>>, %arg7: memref<48x16xf32, #tpu.memory_space<vmem>>, %arg8: memref<1x16xf32, #tpu.memory_space<vmem>>, %arg9: memref<8x16xf32, #tpu.memory_space<vmem>>, %arg10: memref<128x8xf32, #tpu.memory_space<vmem>>, %arg11: memref<1x8xf32, #tpu.memory_space<vmem>>, %arg12: memref<8x4xf32, #tpu.memory_space<vmem>>, %arg13: memref<1x4xf32, #tpu.memory_space<vmem>>, %arg14: memref<8x4xf32, #tpu.memory_space<vmem>>, %arg15: memref<1x4xf32, #tpu.memory_space<vmem>>, %arg16: memref<2x4xf32, #tpu.memory_space<vmem>>, %arg17: memref<2x4xf32, #tpu.memory_space<vmem>>, %arg18: memref<64x9xf32, #tpu.memory_space<vmem>>, %arg19: memref<32x48xf32, #tpu.memory_space<vmem>>, %arg20: memref<2x128xf32, #tpu.memory_space<vmem>>) attributes {dimension_semantics = [#tpu.dimension_semantics<arbitrary>], iteration_bounds = array<i64: 1>, scalar_prefetch = 0 : i64, scratch_operands = 3 : i64, tpu.core_type = #tpu.core_type<tc>, window_params = [{pipeline_mode = #tpu.pipeline_mode<synchronous>, transform_indices = @transform_0, window_bounds = array<i64: 64, 3>}, {pipeline_mode = #tpu.pipeline_mode<synchronous>, transform_indices = @transform_1, window_bounds = array<i64: 32, 32>}, {pipeline_mode = #tpu.pipeline_mode<synchronous>, transform_indices = @transform_2, window_bounds = array<i64: 9, 16>}, {pipeline_mode = #tpu.pipeline_mode<synchronous>, transform_indices = @transform_3, window_bounds = array<i64: 1, 16>}, {pipeline_mode = #tpu.pipeline_mode<synchronous>, transform_indices = @transform_4, window_bounds = array<i64: 16, 32>}, {pipeline_mode = #tpu.pipeline_mode<synchronous>, transform_indices = @transform_5, window_bounds = array<i64: 16, 16>}, {pipeline_mode = #tpu.pipeline_mode<synchronous>, transform_indices = @transform_6, window_bounds = array<i64: 48, 16>}, {pipeline_mode = #tpu.pipeline_mode<synchronous>, transform_indices = @transform_7, window_bounds = array<i64: 1, 16>}, {pipeline_mode = #tpu.pipeline_mode<synchronous>, transform_indices = @transform_8, window_bounds = array<i64: 8, 16>}, {pipeline_mode = #tpu.pipeline_mode<synchronous>, transform_indices = @transform_9, window_bounds = array<i64: 128, 8>}, {pipeline_mode = #tpu.pipeline_mode<synchronous>, transform_indices = @transform_10, window_bounds = array<i64: 1, 8>}, {pipeline_mode = #tpu.pipeline_mode<synchronous>, transform_indices = @transform_11, window_bounds = array<i64: 8, 4>}, {pipeline_mode = #tpu.pipeline_mode<synchronous>, transform_indices = @transform_12, window_bounds = array<i64: 1, 4>}, {pipeline_mode = #tpu.pipeline_mode<synchronous>, transform_indices = @transform_13, window_bounds = array<i64: 8, 4>}, {pipeline_mode = #tpu.pipeline_mode<synchronous>, transform_indices = @transform_14, window_bounds = array<i64: 1, 4>}, {pipeline_mode = #tpu.pipeline_mode<synchronous>, transform_indices = @transform_15, window_bounds = array<i64: 2, 4>}, {pipeline_mode = #tpu.pipeline_mode<synchronous>, transform_indices = @transform_16, window_bounds = array<i64: 2, 4>}]} {
    %c0 = arith.constant 0 : index
    %c0_0 = arith.constant 0 : index
    %0 = vector.load %arg1[%c0, %c0_0] : memref<64x3xf32, #tpu.memory_space<vmem>>, vector<32x3xf32>
    %c32 = arith.constant 32 : index
    %c0_1 = arith.constant 0 : index
    %1 = vector.load %arg1[%c32, %c0_1] : memref<64x3xf32, #tpu.memory_space<vmem>>, vector<32x3xf32>
    %c0_2 = arith.constant 0 : index
    %c0_3 = arith.constant 0 : index
    %2 = vector.load %arg2[%c0_2, %c0_3] : memref<32x32xf32, #tpu.memory_space<vmem>>, vector<32x32xf32>
    %c0_4 = arith.constant 0 : index
    %c0_5 = arith.constant 0 : index
    %3 = vector.load %arg18[%c0_4, %c0_5] : memref<64x9xf32, #tpu.memory_space<vmem>>, vector<32x3xf32>
    tpu.vector_store %arg18[%c0_4, %c0_5], %0 {strides = array<i32>} : memref<64x9xf32, #tpu.memory_space<vmem>>, vector<32x3xf32>,
    %cst = arith.constant dense<0.000000e+00> : vector<32x3xf32>
    %4 = tpu.matmul %2, %0, %cst {dimension_numbers = #tpu.dot_dimension_numbers<[1], [0], [0], [1], [0, 0, 1, 1], [], []>} : vector<32x32xf32>, vector<32x3xf32>, vector<32x3xf32> -> vector<32x3xf32>
    %c0_6 = arith.constant 0 : index
    %c3 = arith.constant 3 : index
    %5 = vector.load %arg18[%c0_6, %c3] : memref<64x9xf32, #tpu.memory_space<vmem>>, vector<32x3xf32>
    tpu.vector_store %arg18[%c0_6, %c3], %4 {strides = array<i32>} : memref<64x9xf32, #tpu.memory_space<vmem>>, vector<32x3xf32>,
    %cst_7 = arith.constant dense<0.000000e+00> : vector<32x3xf32>
    %6 = tpu.matmul %2, %4, %cst_7 {dimension_numbers = #tpu.dot_dimension_numbers<[1], [0], [0], [1], [0, 0, 1, 1], [], []>} : vector<32x32xf32>, vector<32x3xf32>, vector<32x3xf32> -> vector<32x3xf32>
    %cst_8 = arith.constant 2.000000e+00 : f32
    %7 = vector.broadcast %cst_8 : f32 to vector<32x3xf32>
    %8 = arith.mulf %7, %6 : vector<32x3xf32>
    %9 = arith.subf %8, %0 : vector<32x3xf32>
    %c0_9 = arith.constant 0 : index
    %c6 = arith.constant 6 : index
    %10 = vector.load %arg18[%c0_9, %c6] : memref<64x9xf32, #tpu.memory_space<vmem>>, vector<32x3xf32>
    tpu.vector_store %arg18[%c0_9, %c6], %9 {strides = array<i32>} : memref<64x9xf32, #tpu.memory_space<vmem>>, vector<32x3xf32>,
    %c32_10 = arith.constant 32 : index
    %c0_11 = arith.constant 0 : index
    %11 = vector.load %arg18[%c32_10, %c0_11] : memref<64x9xf32, #tpu.memory_space<vmem>>, vector<32x3xf32>
    tpu.vector_store %arg18[%c32_10, %c0_11], %1 {strides = array<i32>} : memref<64x9xf32, #tpu.memory_space<vmem>>, vector<32x3xf32>,
    %cst_12 = arith.constant dense<0.000000e+00> : vector<32x3xf32>
    %12 = tpu.matmul %2, %1, %cst_12 {dimension_numbers = #tpu.dot_dimension_numbers<[1], [0], [0], [1], [0, 0, 1, 1], [], []>} : vector<32x32xf32>, vector<32x3xf32>, vector<32x3xf32> -> vector<32x3xf32>
    %c32_13 = arith.constant 32 : index
    %c3_14 = arith.constant 3 : index
    %13 = vector.load %arg18[%c32_13, %c3_14] : memref<64x9xf32, #tpu.memory_space<vmem>>, vector<32x3xf32>
    tpu.vector_store %arg18[%c32_13, %c3_14], %12 {strides = array<i32>} : memref<64x9xf32, #tpu.memory_space<vmem>>, vector<32x3xf32>,
    %cst_15 = arith.constant dense<0.000000e+00> : vector<32x3xf32>
    %14 = tpu.matmul %2, %12, %cst_15 {dimension_numbers = #tpu.dot_dimension_numbers<[1], [0], [0], [1], [0, 0, 1, 1], [], []>} : vector<32x32xf32>, vector<32x3xf32>, vector<32x3xf32> -> vector<32x3xf32>
    %cst_16 = arith.constant 2.000000e+00 : f32
    %15 = vector.broadcast %cst_16 : f32 to vector<32x3xf32>
    %16 = arith.mulf %15, %14 : vector<32x3xf32>
    %17 = arith.subf %16, %1 : vector<32x3xf32>
    %c32_17 = arith.constant 32 : index
    %c6_18 = arith.constant 6 : index
    %18 = vector.load %arg18[%c32_17, %c6_18] : memref<64x9xf32, #tpu.memory_space<vmem>>, vector<32x3xf32>
    tpu.vector_store %arg18[%c32_17, %c6_18], %17 {strides = array<i32>} : memref<64x9xf32, #tpu.memory_space<vmem>>, vector<32x3xf32>,
    %c0_19 = arith.constant 0 : index
    %c0_20 = arith.constant 0 : index
    %19 = vector.load %arg18[%c0_19, %c0_20] : memref<64x9xf32, #tpu.memory_space<vmem>>, vector<64x9xf32>
    %c0_21 = arith.constant 0 : index
    %c0_22 = arith.constant 0 : index
    %20 = vector.load %arg3[%c0_21, %c0_22] : memref<9x16xf32, #tpu.memory_space<vmem>>, vector<9x16xf32>
    %cst_23 = arith.constant dense<0.000000e+00> : vector<64x16xf32>
    %21 = tpu.matmul %19, %20, %cst_23 {dimension_numbers = #tpu.dot_dimension_numbers<[1], [0], [0], [1], [0, 0, 1, 1], [], []>} : vector<64x9xf32>, vector<9x16xf32>, vector<64x16xf32> -> vector<64x16xf32>
    %c0_24 = arith.constant 0 : index
    %c0_25 = arith.constant 0 : index
    %22 = vector.load %arg4[%c0_24, %c0_25] : memref<1x16xf32, #tpu.memory_space<vmem>>, vector<1x16xf32>
    %23 = vector.broadcast %22 : vector<1x16xf32> to vector<64x16xf32>
    %24 = arith.addf %21, %23 : vector<64x16xf32>
    %cst_26 = arith.constant 0.000000e+00 : f32
    %25 = vector.broadcast %cst_26 : f32 to vector<64x16xf32>
    %26 = arith.cmpf ogt, %24, %25 : vector<64x16xf32>
    %cst_27 = arith.constant 0.000000e+00 : f32
    %27 = vector.broadcast %cst_27 : f32 to vector<64x16xf32>
    %28 = arith.minimumf %24, %27 : vector<64x16xf32>
    %29 = math.exp %28 : vector<64x16xf32>
    %cst_28 = arith.constant 1.000000e+00 : f32
    %30 = vector.broadcast %cst_28 : f32 to vector<64x16xf32>
    %31 = arith.subf %29, %30 : vector<64x16xf32>
    %32 = arith.select %26, %24, %31 : vector<64x16xi1>, vector<64x16xf32>
    %c0_29 = arith.constant 0 : index
    %c0_30 = arith.constant 0 : index
    %33 = vector.load %arg5[%c0_29, %c0_30] : memref<16x32xf32, #tpu.memory_space<vmem>>, vector<16x32xf32>
    %34 = vector.extract_strided_slice %32 {offsets = [0, 0], sizes = [32, 16], strides = [1, 1]} : vector<64x16xf32> to vector<32x16xf32>
    %cst_31 = arith.constant dense<0.000000e+00> : vector<16x16xf32>
    %35 = tpu.matmul %33, %34, %cst_31 {dimension_numbers = #tpu.dot_dimension_numbers<[1], [0], [0], [1], [0, 0, 1, 1], [], []>} : vector<16x32xf32>, vector<32x16xf32>, vector<16x16xf32> -> vector<16x16xf32>
    %36 = vector.extract_strided_slice %32 {offsets = [32, 0], sizes = [32, 16], strides = [1, 1]} : vector<64x16xf32> to vector<32x16xf32>
    %cst_32 = arith.constant dense<0.000000e+00> : vector<16x16xf32>
    %37 = tpu.matmul %33, %36, %cst_32 {dimension_numbers = #tpu.dot_dimension_numbers<[1], [0], [0], [1], [0, 0, 1, 1], [], []>} : vector<16x32xf32>, vector<32x16xf32>, vector<16x16xf32> -> vector<16x16xf32>
    %c0_33 = arith.constant 0 : index
    %c0_34 = arith.constant 0 : index
    %38 = vector.load %arg6[%c0_33, %c0_34] : memref<16x16xf32, #tpu.memory_space<vmem>>, vector<16x16xf32>
    %c0_35 = arith.constant 0 : index
    %c0_36 = arith.constant 0 : index
    %39 = vector.load %arg19[%c0_35, %c0_36] : memref<32x48xf32, #tpu.memory_space<vmem>>, vector<16x16xf32>
    tpu.vector_store %arg19[%c0_35, %c0_36], %35 {strides = array<i32>} : memref<32x48xf32, #tpu.memory_space<vmem>>, vector<16x16xf32>,
    %cst_37 = arith.constant dense<0.000000e+00> : vector<16x16xf32>
    %40 = tpu.matmul %38, %35, %cst_37 {dimension_numbers = #tpu.dot_dimension_numbers<[1], [0], [0], [1], [0, 0, 1, 1], [], []>} : vector<16x16xf32>, vector<16x16xf32>, vector<16x16xf32> -> vector<16x16xf32>
    %c0_38 = arith.constant 0 : index
    %c16 = arith.constant 16 : index
    %41 = vector.load %arg19[%c0_38, %c16] : memref<32x48xf32, #tpu.memory_space<vmem>>, vector<16x16xf32>
    tpu.vector_store %arg19[%c0_38, %c16], %40 {strides = array<i32>} : memref<32x48xf32, #tpu.memory_space<vmem>>, vector<16x16xf32>,
    %cst_39 = arith.constant dense<0.000000e+00> : vector<16x16xf32>
    %42 = tpu.matmul %38, %40, %cst_39 {dimension_numbers = #tpu.dot_dimension_numbers<[1], [0], [0], [1], [0, 0, 1, 1], [], []>} : vector<16x16xf32>, vector<16x16xf32>, vector<16x16xf32> -> vector<16x16xf32>
    %cst_40 = arith.constant 2.000000e+00 : f32
    %43 = vector.broadcast %cst_40 : f32 to vector<16x16xf32>
    %44 = arith.mulf %43, %42 : vector<16x16xf32>
    %45 = arith.subf %44, %35 : vector<16x16xf32>
    %c0_41 = arith.constant 0 : index
    %c32_42 = arith.constant 32 : index
    %46 = vector.load %arg19[%c0_41, %c32_42] : memref<32x48xf32, #tpu.memory_space<vmem>>, vector<16x16xf32>
    tpu.vector_store %arg19[%c0_41, %c32_42], %45 {strides = array<i32>} : memref<32x48xf32, #tpu.memory_space<vmem>>, vector<16x16xf32>,
    %c16_43 = arith.constant 16 : index
    %c0_44 = arith.constant 0 : index
    %47 = vector.load %arg19[%c16_43, %c0_44] : memref<32x48xf32, #tpu.memory_space<vmem>>, vector<16x16xf32>
    tpu.vector_store %arg19[%c16_43, %c0_44], %37 {strides = array<i32>} : memref<32x48xf32, #tpu.memory_space<vmem>>, vector<16x16xf32>,
    %cst_45 = arith.constant dense<0.000000e+00> : vector<16x16xf32>
    %48 = tpu.matmul %38, %37, %cst_45 {dimension_numbers = #tpu.dot_dimension_numbers<[1], [0], [0], [1], [0, 0, 1, 1], [], []>} : vector<16x16xf32>, vector<16x16xf32>, vector<16x16xf32> -> vector<16x16xf32>
    %c16_46 = arith.constant 16 : index
    %c16_47 = arith.constant 16 : index
    %49 = vector.load %arg19[%c16_46, %c16_47] : memref<32x48xf32, #tpu.memory_space<vmem>>, vector<16x16xf32>
    tpu.vector_store %arg19[%c16_46, %c16_47], %48 {strides = array<i32>} : memref<32x48xf32, #tpu.memory_space<vmem>>, vector<16x16xf32>,
    %cst_48 = arith.constant dense<0.000000e+00> : vector<16x16xf32>
    %50 = tpu.matmul %38, %48, %cst_48 {dimension_numbers = #tpu.dot_dimension_numbers<[1], [0], [0], [1], [0, 0, 1, 1], [], []>} : vector<16x16xf32>, vector<16x16xf32>, vector<16x16xf32> -> vector<16x16xf32>
    %cst_49 = arith.constant 2.000000e+00 : f32
    %51 = vector.broadcast %cst_49 : f32 to vector<16x16xf32>
    %52 = arith.mulf %51, %50 : vector<16x16xf32>
    %53 = arith.subf %52, %37 : vector<16x16xf32>
    %c16_50 = arith.constant 16 : index
    %c32_51 = arith.constant 32 : index
    %54 = vector.load %arg19[%c16_50, %c32_51] : memref<32x48xf32, #tpu.memory_space<vmem>>, vector<16x16xf32>
    tpu.vector_store %arg19[%c16_50, %c32_51], %53 {strides = array<i32>} : memref<32x48xf32, #tpu.memory_space<vmem>>, vector<16x16xf32>,
    %c0_52 = arith.constant 0 : index
    %c0_53 = arith.constant 0 : index
    %55 = vector.load %arg19[%c0_52, %c0_53] : memref<32x48xf32, #tpu.memory_space<vmem>>, vector<32x48xf32>
    %c0_54 = arith.constant 0 : index
    %c0_55 = arith.constant 0 : index
    %56 = vector.load %arg7[%c0_54, %c0_55] : memref<48x16xf32, #tpu.memory_space<vmem>>, vector<48x16xf32>
    %cst_56 = arith.constant dense<0.000000e+00> : vector<32x16xf32>
    %57 = tpu.matmul %55, %56, %cst_56 {dimension_numbers = #tpu.dot_dimension_numbers<[1], [0], [0], [1], [0, 0, 1, 1], [], []>} : vector<32x48xf32>, vector<48x16xf32>, vector<32x16xf32> -> vector<32x16xf32>
    %c0_57 = arith.constant 0 : index
    %c0_58 = arith.constant 0 : index
    %58 = vector.load %arg8[%c0_57, %c0_58] : memref<1x16xf32, #tpu.memory_space<vmem>>, vector<1x16xf32>
    %59 = vector.broadcast %58 : vector<1x16xf32> to vector<32x16xf32>
    %60 = arith.addf %57, %59 : vector<32x16xf32>
    %cst_59 = arith.constant 0.000000e+00 : f32
    %61 = vector.broadcast %cst_59 : f32 to vector<32x16xf32>
    %62 = arith.cmpf ogt, %60, %61 : vector<32x16xf32>
    %cst_60 = arith.constant 0.000000e+00 : f32
    %63 = vector.broadcast %cst_60 : f32 to vector<32x16xf32>
    %64 = arith.minimumf %60, %63 : vector<32x16xf32>
    %65 = math.exp %64 : vector<32x16xf32>
    %cst_61 = arith.constant 1.000000e+00 : f32
    %66 = vector.broadcast %cst_61 : f32 to vector<32x16xf32>
    %67 = arith.subf %65, %66 : vector<32x16xf32>
    %68 = arith.select %62, %60, %67 : vector<32x16xi1>, vector<32x16xf32>
    %c0_62 = arith.constant 0 : index
    %c0_63 = arith.constant 0 : index
    %69 = vector.load %arg9[%c0_62, %c0_63] : memref<8x16xf32, #tpu.memory_space<vmem>>, vector<8x16xf32>
    %70 = vector.extract_strided_slice %68 {offsets = [0, 0], sizes = [16, 16], strides = [1, 1]} : vector<32x16xf32> to vector<16x16xf32>
    %cst_64 = arith.constant dense<0.000000e+00> : vector<8x16xf32>
    %71 = tpu.matmul %69, %70, %cst_64 {dimension_numbers = #tpu.dot_dimension_numbers<[1], [0], [0], [1], [0, 0, 1, 1], [], []>} : vector<8x16xf32>, vector<16x16xf32>, vector<8x16xf32> -> vector<8x16xf32>
    %72 = vector.extract_strided_slice %68 {offsets = [16, 0], sizes = [16, 16], strides = [1, 1]} : vector<32x16xf32> to vector<16x16xf32>
    %cst_65 = arith.constant dense<0.000000e+00> : vector<8x16xf32>
    %73 = tpu.matmul %69, %72, %cst_65 {dimension_numbers = #tpu.dot_dimension_numbers<[1], [0], [0], [1], [0, 0, 1, 1], [], []>} : vector<8x16xf32>, vector<16x16xf32>, vector<8x16xf32> -> vector<8x16xf32>
    %74 = vector.extract_strided_slice %71 {offsets = [0, 0], sizes = [1, 16], strides = [1, 1]} : vector<8x16xf32> to vector<1x16xf32>
    %c0_66 = arith.constant 0 : index
    %c0_67 = arith.constant 0 : index
    %75 = vector.load %arg20[%c0_66, %c0_67] : memref<2x128xf32, #tpu.memory_space<vmem>>, vector<1x16xf32>
    tpu.vector_store %arg20[%c0_66, %c0_67], %74 {strides = array<i32>} : memref<2x128xf32, #tpu.memory_space<vmem>>, vector<1x16xf32>,
    %76 = vector.extract_strided_slice %71 {offsets = [1, 0], sizes = [1, 16], strides = [1, 1]} : vector<8x16xf32> to vector<1x16xf32>
    %c0_68 = arith.constant 0 : index
    %c16_69 = arith.constant 16 : index
    %77 = vector.load %arg20[%c0_68, %c16_69] : memref<2x128xf32, #tpu.memory_space<vmem>>, vector<1x16xf32>
    tpu.vector_store %arg20[%c0_68, %c16_69], %76 {strides = array<i32>} : memref<2x128xf32, #tpu.memory_space<vmem>>, vector<1x16xf32>,
    %78 = vector.extract_strided_slice %71 {offsets = [2, 0], sizes = [1, 16], strides = [1, 1]} : vector<8x16xf32> to vector<1x16xf32>
    %c0_70 = arith.constant 0 : index
    %c32_71 = arith.constant 32 : index
    %79 = vector.load %arg20[%c0_70, %c32_71] : memref<2x128xf32, #tpu.memory_space<vmem>>, vector<1x16xf32>
    tpu.vector_store %arg20[%c0_70, %c32_71], %78 {strides = array<i32>} : memref<2x128xf32, #tpu.memory_space<vmem>>, vector<1x16xf32>,
    %80 = vector.extract_strided_slice %71 {offsets = [3, 0], sizes = [1, 16], strides = [1, 1]} : vector<8x16xf32> to vector<1x16xf32>
    %c0_72 = arith.constant 0 : index
    %c48 = arith.constant 48 : index
    %81 = vector.load %arg20[%c0_72, %c48] : memref<2x128xf32, #tpu.memory_space<vmem>>, vector<1x16xf32>
    tpu.vector_store %arg20[%c0_72, %c48], %80 {strides = array<i32>} : memref<2x128xf32, #tpu.memory_space<vmem>>, vector<1x16xf32>,
    %82 = vector.extract_strided_slice %71 {offsets = [4, 0], sizes = [1, 16], strides = [1, 1]} : vector<8x16xf32> to vector<1x16xf32>
    %c0_73 = arith.constant 0 : index
    %c64 = arith.constant 64 : index
    %83 = vector.load %arg20[%c0_73, %c64] : memref<2x128xf32, #tpu.memory_space<vmem>>, vector<1x16xf32>
    tpu.vector_store %arg20[%c0_73, %c64], %82 {strides = array<i32>} : memref<2x128xf32, #tpu.memory_space<vmem>>, vector<1x16xf32>,
    %84 = vector.extract_strided_slice %71 {offsets = [5, 0], sizes = [1, 16], strides = [1, 1]} : vector<8x16xf32> to vector<1x16xf32>
    %c0_74 = arith.constant 0 : index
    %c80 = arith.constant 80 : index
    %85 = vector.load %arg20[%c0_74, %c80] : memref<2x128xf32, #tpu.memory_space<vmem>>, vector<1x16xf32>
    tpu.vector_store %arg20[%c0_74, %c80], %84 {strides = array<i32>} : memref<2x128xf32, #tpu.memory_space<vmem>>, vector<1x16xf32>,
    %86 = vector.extract_strided_slice %71 {offsets = [6, 0], sizes = [1, 16], strides = [1, 1]} : vector<8x16xf32> to vector<1x16xf32>
    %c0_75 = arith.constant 0 : index
    %c96 = arith.constant 96 : index
    %87 = vector.load %arg20[%c0_75, %c96] : memref<2x128xf32, #tpu.memory_space<vmem>>, vector<1x16xf32>
    tpu.vector_store %arg20[%c0_75, %c96], %86 {strides = array<i32>} : memref<2x128xf32, #tpu.memory_space<vmem>>, vector<1x16xf32>,
    %88 = vector.extract_strided_slice %71 {offsets = [7, 0], sizes = [1, 16], strides = [1, 1]} : vector<8x16xf32> to vector<1x16xf32>
    %c0_76 = arith.constant 0 : index
    %c112 = arith.constant 112 : index
    %89 = vector.load %arg20[%c0_76, %c112] : memref<2x128xf32, #tpu.memory_space<vmem>>, vector<1x16xf32>
    tpu.vector_store %arg20[%c0_76, %c112], %88 {strides = array<i32>} : memref<2x128xf32, #tpu.memory_space<vmem>>, vector<1x16xf32>,
    %90 = vector.extract_strided_slice %73 {offsets = [0, 0], sizes = [1, 16], strides = [1, 1]} : vector<8x16xf32> to vector<1x16xf32>
    %c1 = arith.constant 1 : index
    %c0_77 = arith.constant 0 : index
    %91 = vector.load %arg20[%c1, %c0_77] : memref<2x128xf32, #tpu.memory_space<vmem>>, vector<1x16xf32>
    tpu.vector_store %arg20[%c1, %c0_77], %90 {strides = array<i32>} : memref<2x128xf32, #tpu.memory_space<vmem>>, vector<1x16xf32>,
    %92 = vector.extract_strided_slice %73 {offsets = [1, 0], sizes = [1, 16], strides = [1, 1]} : vector<8x16xf32> to vector<1x16xf32>
    %c1_78 = arith.constant 1 : index
    %c16_79 = arith.constant 16 : index
    %93 = vector.load %arg20[%c1_78, %c16_79] : memref<2x128xf32, #tpu.memory_space<vmem>>, vector<1x16xf32>
    tpu.vector_store %arg20[%c1_78, %c16_79], %92 {strides = array<i32>} : memref<2x128xf32, #tpu.memory_space<vmem>>, vector<1x16xf32>,
    %94 = vector.extract_strided_slice %73 {offsets = [2, 0], sizes = [1, 16], strides = [1, 1]} : vector<8x16xf32> to vector<1x16xf32>
    %c1_80 = arith.constant 1 : index
    %c32_81 = arith.constant 32 : index
    %95 = vector.load %arg20[%c1_80, %c32_81] : memref<2x128xf32, #tpu.memory_space<vmem>>, vector<1x16xf32>
    tpu.vector_store %arg20[%c1_80, %c32_81], %94 {strides = array<i32>} : memref<2x128xf32, #tpu.memory_space<vmem>>, vector<1x16xf32>,
    %96 = vector.extract_strided_slice %73 {offsets = [3, 0], sizes = [1, 16], strides = [1, 1]} : vector<8x16xf32> to vector<1x16xf32>
    %c1_82 = arith.constant 1 : index
    %c48_83 = arith.constant 48 : index
    %97 = vector.load %arg20[%c1_82, %c48_83] : memref<2x128xf32, #tpu.memory_space<vmem>>, vector<1x16xf32>
    tpu.vector_store %arg20[%c1_82, %c48_83], %96 {strides = array<i32>} : memref<2x128xf32, #tpu.memory_space<vmem>>, vector<1x16xf32>,
    %98 = vector.extract_strided_slice %73 {offsets = [4, 0], sizes = [1, 16], strides = [1, 1]} : vector<8x16xf32> to vector<1x16xf32>
    %c1_84 = arith.constant 1 : index
    %c64_85 = arith.constant 64 : index
    %99 = vector.load %arg20[%c1_84, %c64_85] : memref<2x128xf32, #tpu.memory_space<vmem>>, vector<1x16xf32>
    tpu.vector_store %arg20[%c1_84, %c64_85], %98 {strides = array<i32>} : memref<2x128xf32, #tpu.memory_space<vmem>>, vector<1x16xf32>,
    %100 = vector.extract_strided_slice %73 {offsets = [5, 0], sizes = [1, 16], strides = [1, 1]} : vector<8x16xf32> to vector<1x16xf32>
    %c1_86 = arith.constant 1 : index
    %c80_87 = arith.constant 80 : index
    %101 = vector.load %arg20[%c1_86, %c80_87] : memref<2x128xf32, #tpu.memory_space<vmem>>, vector<1x16xf32>
    tpu.vector_store %arg20[%c1_86, %c80_87], %100 {strides = array<i32>} : memref<2x128xf32, #tpu.memory_space<vmem>>, vector<1x16xf32>,
    %102 = vector.extract_strided_slice %73 {offsets = [6, 0], sizes = [1, 16], strides = [1, 1]} : vector<8x16xf32> to vector<1x16xf32>
    %c1_88 = arith.constant 1 : index
    %c96_89 = arith.constant 96 : index
    %103 = vector.load %arg20[%c1_88, %c96_89] : memref<2x128xf32, #tpu.memory_space<vmem>>, vector<1x16xf32>
    tpu.vector_store %arg20[%c1_88, %c96_89], %102 {strides = array<i32>} : memref<2x128xf32, #tpu.memory_space<vmem>>, vector<1x16xf32>,
    %104 = vector.extract_strided_slice %73 {offsets = [7, 0], sizes = [1, 16], strides = [1, 1]} : vector<8x16xf32> to vector<1x16xf32>
    %c1_90 = arith.constant 1 : index
    %c112_91 = arith.constant 112 : index
    %105 = vector.load %arg20[%c1_90, %c112_91] : memref<2x128xf32, #tpu.memory_space<vmem>>, vector<1x16xf32>
    tpu.vector_store %arg20[%c1_90, %c112_91], %104 {strides = array<i32>} : memref<2x128xf32, #tpu.memory_space<vmem>>, vector<1x16xf32>,
    %c0_92 = arith.constant 0 : index
    %c0_93 = arith.constant 0 : index
    %106 = vector.load %arg20[%c0_92, %c0_93] : memref<2x128xf32, #tpu.memory_space<vmem>>, vector<2x128xf32>
    %c0_94 = arith.constant 0 : index
    %c0_95 = arith.constant 0 : index
    %107 = vector.load %arg10[%c0_94, %c0_95] : memref<128x8xf32, #tpu.memory_space<vmem>>, vector<128x8xf32>
    %cst_96 = arith.constant dense<0.000000e+00> : vector<2x8xf32>
    %108 = tpu.matmul %106, %107, %cst_96 {dimension_numbers = #tpu.dot_dimension_numbers<[1], [0], [0], [1], [0, 0, 1, 1], [], []>} : vector<2x128xf32>, vector<128x8xf32>, vector<2x8xf32> -> vector<2x8xf32>
    %c0_97 = arith.constant 0 : index
    %c0_98 = arith.constant 0 : index
    %109 = vector.load %arg11[%c0_97, %c0_98] : memref<1x8xf32, #tpu.memory_space<vmem>>, vector<1x8xf32>
    %110 = vector.broadcast %109 : vector<1x8xf32> to vector<2x8xf32>
    %111 = arith.addf %108, %110 : vector<2x8xf32>
    %c0_99 = arith.constant 0 : index
    %c0_100 = arith.constant 0 : index
    %112 = vector.load %arg12[%c0_99, %c0_100] : memref<8x4xf32, #tpu.memory_space<vmem>>, vector<8x4xf32>
    %cst_101 = arith.constant dense<0.000000e+00> : vector<2x4xf32>
    %113 = tpu.matmul %111, %112, %cst_101 {dimension_numbers = #tpu.dot_dimension_numbers<[1], [0], [0], [1], [0, 0, 1, 1], [], []>} : vector<2x8xf32>, vector<8x4xf32>, vector<2x4xf32> -> vector<2x4xf32>
    %c0_102 = arith.constant 0 : index
    %c0_103 = arith.constant 0 : index
    %114 = vector.load %arg13[%c0_102, %c0_103] : memref<1x4xf32, #tpu.memory_space<vmem>>, vector<1x4xf32>
    %115 = vector.broadcast %114 : vector<1x4xf32> to vector<2x4xf32>
    %116 = arith.addf %113, %115 : vector<2x4xf32>
    %c0_104 = arith.constant 0 : index
    %c0_105 = arith.constant 0 : index
    %117 = vector.load %arg14[%c0_104, %c0_105] : memref<8x4xf32, #tpu.memory_space<vmem>>, vector<8x4xf32>
    %cst_106 = arith.constant dense<0.000000e+00> : vector<2x4xf32>
    %118 = tpu.matmul %111, %117, %cst_106 {dimension_numbers = #tpu.dot_dimension_numbers<[1], [0], [0], [1], [0, 0, 1, 1], [], []>} : vector<2x8xf32>, vector<8x4xf32>, vector<2x4xf32> -> vector<2x4xf32>
    %c0_107 = arith.constant 0 : index
    %c0_108 = arith.constant 0 : index
    %119 = vector.load %arg15[%c0_107, %c0_108] : memref<1x4xf32, #tpu.memory_space<vmem>>, vector<1x4xf32>
    %120 = vector.broadcast %119 : vector<1x4xf32> to vector<2x4xf32>
    %121 = arith.addf %118, %120 : vector<2x4xf32>
    %c0_109 = arith.constant 0 : index
    %c0_110 = arith.constant 0 : index
    %122 = vector.load %arg16[%c0_109, %c0_110] : memref<2x4xf32, #tpu.memory_space<vmem>>, vector<2x4xf32>
    tpu.vector_store %arg16[%c0_109, %c0_110], %116 {strides = array<i32>} : memref<2x4xf32, #tpu.memory_space<vmem>>, vector<2x4xf32>,
    %cst_111 = arith.constant 5.000000e-01 : f32
    %123 = vector.broadcast %cst_111 : f32 to vector<2x4xf32>
    %124 = arith.mulf %123, %121 : vector<2x4xf32>
    %125 = math.exp %124 : vector<2x4xf32>
    %c0_112 = arith.constant 0 : index
    %c0_113 = arith.constant 0 : index
    %126 = vector.load %arg17[%c0_112, %c0_113] : memref<2x4xf32, #tpu.memory_space<vmem>>, vector<2x4xf32>
    tpu.vector_store %arg17[%c0_112, %c0_113], %125 {strides = array<i32>} : memref<2x4xf32, #tpu.memory_space<vmem>>, vector<2x4xf32>,
    return
  }
  func.func @transform_0(%arg0: i32) -> (i32, i32) {
    %c0_i32 = arith.constant 0 : i32
    %c0_i32_0 = arith.constant 0 : i32
    %c0_i32_1 = arith.constant 0 : i32
    return %c0_i32, %c0_i32_0 : i32, i32
  }
  func.func @transform_1(%arg0: i32) -> (i32, i32) {
    %c0_i32 = arith.constant 0 : i32
    %c0_i32_0 = arith.constant 0 : i32
    %c0_i32_1 = arith.constant 0 : i32
    return %c0_i32, %c0_i32_0 : i32, i32
  }
  func.func @transform_2(%arg0: i32) -> (i32, i32) {
    %c0_i32 = arith.constant 0 : i32
    %c0_i32_0 = arith.constant 0 : i32
    %c0_i32_1 = arith.constant 0 : i32
    return %c0_i32, %c0_i32_0 : i32, i32
  }
  func.func @transform_3(%arg0: i32) -> (i32, i32) {
    %c0_i32 = arith.constant 0 : i32
    %c0_i32_0 = arith.constant 0 : i32
    %c0_i32_1 = arith.constant 0 : i32
    return %c0_i32, %c0_i32_0 : i32, i32
  }
  func.func @transform_4(%arg0: i32) -> (i32, i32) {
    %c0_i32 = arith.constant 0 : i32
    %c0_i32_0 = arith.constant 0 : i32
    %c0_i32_1 = arith.constant 0 : i32
    return %c0_i32, %c0_i32_0 : i32, i32
  }
  func.func @transform_5(%arg0: i32) -> (i32, i32) {
    %c0_i32 = arith.constant 0 : i32
    %c0_i32_0 = arith.constant 0 : i32
    %c0_i32_1 = arith.constant 0 : i32
    return %c0_i32, %c0_i32_0 : i32, i32
  }
  func.func @transform_6(%arg0: i32) -> (i32, i32) {
    %c0_i32 = arith.constant 0 : i32
    %c0_i32_0 = arith.constant 0 : i32
    %c0_i32_1 = arith.constant 0 : i32
    return %c0_i32, %c0_i32_0 : i32, i32
  }
  func.func @transform_7(%arg0: i32) -> (i32, i32) {
    %c0_i32 = arith.constant 0 : i32
    %c0_i32_0 = arith.constant 0 : i32
    %c0_i32_1 = arith.constant 0 : i32
    return %c0_i32, %c0_i32_0 : i32, i32
  }
  func.func @transform_8(%arg0: i32) -> (i32, i32) {
    %c0_i32 = arith.constant 0 : i32
    %c0_i32_0 = arith.constant 0 : i32
    %c0_i32_1 = arith.constant 0 : i32
    return %c0_i32, %c0_i32_0 : i32, i32
  }
  func.func @transform_9(%arg0: i32) -> (i32, i32) {
    %c0_i32 = arith.constant 0 : i32
    %c0_i32_0 = arith.constant 0 : i32
    %c0_i32_1 = arith.constant 0 : i32
    return %c0_i32, %c0_i32_0 : i32, i32
  }
  func.func @transform_10(%arg0: i32) -> (i32, i32) {
    %c0_i32 = arith.constant 0 : i32
    %c0_i32_0 = arith.constant 0 : i32
    %c0_i32_1 = arith.constant 0 : i32
    return %c0_i32, %c0_i32_0 : i32, i32
  }
  func.func @transform_11(%arg0: i32) -> (i32, i32) {
    %c0_i32 = arith.constant 0 : i32
    %c0_i32_0 = arith.constant 0 : i32
    %c0_i32_1 = arith.constant 0 : i32
    return %c0_i32, %c0_i32_0 : i32, i32
  }
  func.func @transform_12(%arg0: i32) -> (i32, i32) {
    %c0_i32 = arith.constant 0 : i32
    %c0_i32_0 = arith.constant 0 : i32
    %c0_i32_1 = arith.constant 0 : i32
    return %c0_i32, %c0_i32_0 : i32, i32
  }
  func.func @transform_13(%arg0: i32) -> (i32, i32) {
    %c0_i32 = arith.constant 0 : i32
    %c0_i32_0 = arith.constant 0 : i32
    %c0_i32_1 = arith.constant 0 : i32
    return %c0_i32, %c0_i32_0 : i32, i32
  }
  func.func @transform_14(%arg0: i32) -> (i32, i32) {
    %c0_i32 = arith.constant 0 : i32
    %c0_i32_0 = arith.constant 0 : i32
    %c0_i32_1 = arith.constant 0 : i32
    return %c0_i32, %c0_i32_0 : i32, i32
  }
  func.func @transform_15(%arg0: i32) -> (i32, i32) {
    %c0_i32 = arith.constant 0 : i32
    %c0_i32_0 = arith.constant 0 : i32
    %c0_i32_1 = arith.constant 0 : i32
    return %c0_i32, %c0_i32_0 : i32, i32
  }
  func.func @transform_16(%arg0: i32) -> (i32, i32) {
    %c0_i32 = arith.constant 0 : i32
    %c0_i32_0 = arith.constant 0 : i32
    %c0_i32_1 = arith.constant 0 : i32
    return %c0_i32, %c0_i32_0 : i32, i32
  }
}

</mosaic_0001>

<llo_original>
// kernel: tpu_custom_call.1
$region0: #{tpu_custom_call.1}
  #allocation0 [shape = 'u32[]', space=smem, size = 0x4, offset = 0x4, fixed_abs, tag = 'smem constant byte address 0x4 - core index']
  #allocation1 [shape = 'u32[72,128]{1,0:T(1,128)}', space=vmem, size = 0x9000, scoped, tag = 'internal scratch']
  #allocation2 [shape = 'f32[64,9]{1,0:T(8,128)}', space=vmem, size = 0x8000, scoped, tag = 'scratch operand']
  #allocation3 [shape = 'f32[32,48]{1,0:T(8,128)}', space=vmem, size = 0x4000, scoped, tag = 'scratch operand']
  #allocation4 [shape = 'f32[2,128]{1,0:T(2,128)}', space=vmem, size = 0x400, scoped, tag = 'scratch operand']
  %s0 = inlined_call_operand.vmem [shape: f32[64,3], index: 0, kind: input, shape index: {}]
  %s1 = inlined_call_operand.vmem [shape: f32[32,32], index: 1, kind: input, shape index: {}]
  %s2 = inlined_call_operand.vmem [shape: f32[9,16], index: 2, kind: input, shape index: {}]
  %s3 = inlined_call_operand.vmem [shape: f32[1,16], index: 3, kind: input, shape index: {}]
  %s4 = inlined_call_operand.vmem [shape: f32[16,32], index: 4, kind: input, shape index: {}]
  %s5 = inlined_call_operand.vmem [shape: f32[16,16], index: 5, kind: input, shape index: {}]
  %s6 = inlined_call_operand.vmem [shape: f32[48,16], index: 6, kind: input, shape index: {}]
  %s7 = inlined_call_operand.vmem [shape: f32[1,16], index: 7, kind: input, shape index: {}]
  %s8 = inlined_call_operand.vmem [shape: f32[8,16], index: 8, kind: input, shape index: {}]
  %s9 = inlined_call_operand.vmem [shape: f32[128,8], index: 9, kind: input, shape index: {}]
  %s10 = inlined_call_operand.vmem [shape: f32[1,8], index: 10, kind: input, shape index: {}]
  %s11 = inlined_call_operand.vmem [shape: f32[8,4], index: 11, kind: input, shape index: {}]
  %s12 = inlined_call_operand.vmem [shape: f32[1,4], index: 12, kind: input, shape index: {}]
  %s13 = inlined_call_operand.vmem [shape: f32[8,4], index: 13, kind: input, shape index: {}]
  %s14 = inlined_call_operand.vmem [shape: f32[1,4], index: 14, kind: input, shape index: {}]
  %s15 = inlined_call_operand.hbm [shape: f32[2,4], index: 15, kind: output, shape index: {0}]
  %s16 = inlined_call_operand.hbm [shape: f32[2,4], index: 16, kind: output, shape index: {1}]
  %17 = xla_tuple %s15, %s16
  %s18 = sld [smem:[#allocation0]]
  $region78: #{tpu_custom_call.1} parent=0
    _
  %s20 = ssub.s32 1, %s18
  %s21 = scalar_select 0, %s20, %s18
  $region1: #{tpu_custom_call.1} parent=0
    #allocation5 [shape = 'u8[1024]{0}', space=vmem, size = 0x400, scoped, tag = 'output window, operand 0, single buffered']
    #allocation6 [shape = 's32[1]{0}', space=sflag, size = 0x4, scoped, tag = 'scoped memory for tpu_custom_call.1']
    #allocation7 [shape = 'u8[1024]{0}', space=vmem, size = 0x400, scoped, tag = 'output window, operand 1, single buffered']
    #allocation8 [shape = 's32[1]{0}', space=sflag, size = 0x4, scoped, tag = 'scoped memory for tpu_custom_call.1']
    %22 = vsyncpa [#allocation6], 0
    %23 = vsyncpa [#allocation8], 0
    // Predicated region
    $region2: #{tpu_custom_call.1} parent=1 // pred_check
      _
    $region3: #{tpu_custom_call.1} parent=1 // pred_check_branch
      %25 = sbr.rel (0) target = $region5
    $region4: #{tpu_custom_call.1} parent=1 // pred_region
      _
    $region5: #{tpu_custom_call.1} parent=1 // pred_fallthru
      _
    // Predicated region
    $region6: #{tpu_custom_call.1} parent=1 // pred_check
      _
    $region7: #{tpu_custom_call.1} parent=1 // pred_check_branch
      %27 = sbr.rel (0) target = $region9
    $region8: #{tpu_custom_call.1} parent=1 // pred_region
      _
    $region9: #{tpu_custom_call.1} parent=1 // pred_fallthru
      _
    // Predicated region
    $region10: #{tpu_custom_call.1} parent=1 // pred_check
      _
    $region11: #{tpu_custom_call.1} parent=1 // pred_check_branch
      %29 = sbr.rel (0) target = $region13
    $region12: #{tpu_custom_call.1} parent=1 // pred_region
      _
    $region13: #{tpu_custom_call.1} parent=1 // pred_fallthru
      _
    // Predicated region
    $region14: #{tpu_custom_call.1} parent=1 // pred_check
      _
    $region15: #{tpu_custom_call.1} parent=1 // pred_check_branch
      %31 = sbr.rel (0) target = $region17
    $region16: #{tpu_custom_call.1} parent=1 // pred_region
      _
    $region17: #{tpu_custom_call.1} parent=1 // pred_fallthru
      _
    // Predicated region
    $region18: #{tpu_custom_call.1} parent=1 // pred_check
      _
    $region19: #{tpu_custom_call.1} parent=1 // pred_check_branch
      %33 = sbr.rel (0) target = $region21
    $region20: #{tpu_custom_call.1} parent=1 // pred_region
      _
    $region21: #{tpu_custom_call.1} parent=1 // pred_fallthru
      _
    // Predicated region
    $region22: #{tpu_custom_call.1} parent=1 // pred_check
      _
    $region23: #{tpu_custom_call.1} parent=1 // pred_check_branch
      %35 = sbr.rel (0) target = $region25
    $region24: #{tpu_custom_call.1} parent=1 // pred_region
      _
    $region25: #{tpu_custom_call.1} parent=1 // pred_fallthru
      _
    // Predicated region
    $region26: #{tpu_custom_call.1} parent=1 // pred_check
      _
    $region27: #{tpu_custom_call.1} parent=1 // pred_check_branch
      %37 = sbr.rel (0) target = $region29
    $region28: #{tpu_custom_call.1} parent=1 // pred_region
      _
    $region29: #{tpu_custom_call.1} parent=1 // pred_fallthru
      _
    // Predicated region
    $region30: #{tpu_custom_call.1} parent=1 // pred_check
      _
    $region31: #{tpu_custom_call.1} parent=1 // pred_check_branch
      %39 = sbr.rel (0) target = $region33
    $region32: #{tpu_custom_call.1} parent=1 // pred_region
      _
    $region33: #{tpu_custom_call.1} parent=1 // pred_fallthru
      _
    // Predicated region
    $region34: #{tpu_custom_call.1} parent=1 // pred_check
      _
    $region35: #{tpu_custom_call.1} parent=1 // pred_check_branch
      %41 = sbr.rel (0) target = $region37
    $region36: #{tpu_custom_call.1} parent=1 // pred_region
      _
    $region37: #{tpu_custom_call.1} parent=1 // pred_fallthru
      _
    // Predicated region
    $region38: #{tpu_custom_call.1} parent=1 // pred_check
      _
    $region39: #{tpu_custom_call.1} parent=1 // pred_check_branch
      %43 = sbr.rel (0) target = $region41
    $region40: #{tpu_custom_call.1} parent=1 // pred_region
      _
    $region41: #{tpu_custom_call.1} parent=1 // pred_fallthru
      _
    // Predicated region
    $region42: #{tpu_custom_call.1} parent=1 // pred_check
      _
    $region43: #{tpu_custom_call.1} parent=1 // pred_check_branch
      %45 = sbr.rel (0) target = $region45
    $region44: #{tpu_custom_call.1} parent=1 // pred_region
      _
    $region45: #{tpu_custom_call.1} parent=1 // pred_fallthru
      _
    // Predicated region
    $region46: #{tpu_custom_call.1} parent=1 // pred_check
      _
    $region47: #{tpu_custom_call.1} parent=1 // pred_check_branch
      %47 = sbr.rel (0) target = $region49
    $region48: #{tpu_custom_call.1} parent=1 // pred_region
      _
    $region49: #{tpu_custom_call.1} parent=1 // pred_fallthru
      _
    // Predicated region
    $region50: #{tpu_custom_call.1} parent=1 // pred_check
      _
    $region51: #{tpu_custom_call.1} parent=1 // pred_check_branch
      %49 = sbr.rel (0) target = $region53
    $region52: #{tpu_custom_call.1} parent=1 // pred_region
      _
    $region53: #{tpu_custom_call.1} parent=1 // pred_fallthru
      _
    // Predicated region
    $region54: #{tpu_custom_call.1} parent=1 // pred_check
      _
    $region55: #{tpu_custom_call.1} parent=1 // pred_check_branch
      %51 = sbr.rel (0) target = $region57
    $region56: #{tpu_custom_call.1} parent=1 // pred_region
      _
    $region57: #{tpu_custom_call.1} parent=1 // pred_fallthru
      _
    // Predicated region
    $region58: #{tpu_custom_call.1} parent=1 // pred_check
      _
    $region59: #{tpu_custom_call.1} parent=1 // pred_check_branch
      %53 = sbr.rel (0) target = $region61
    $region60: #{tpu_custom_call.1} parent=1 // pred_region
      _
    $region61: #{tpu_custom_call.1} parent=1 // pred_fallthru
      _
    %v54 = vld [vmem:[%s0] sm:$0xff]
    %v55 = vld [vmem:[%s0 + $0x8] sm:$0xff]
    %v56 = vld [vmem:[%s0 + $0x10] sm:$0xff]
    %v57 = vld [vmem:[%s0 + $0x18] sm:$0xff]
    %v58 = vld [vmem:[%s0 + $0x20] sm:$0xff]
    %v59 = vld [vmem:[%s0 + $0x28] sm:$0xff]
    %v60 = vld [vmem:[%s0 + $0x30] sm:$0xff]
    %v61 = vld [vmem:[%s0 + $0x38] sm:$0xff]
    %v62 = vld [vmem:[%s1] sm:$0xff]
    %v63 = vld [vmem:[%s1 + $0x8] sm:$0xff]
    %v64 = vld [vmem:[%s1 + $0x10] sm:$0xff]
    %v65 = vld [vmem:[%s1 + $0x18] sm:$0xff]
    %vm66 = vcmask 23552
    %67 = vst.msk [vmem:[#allocation2] sm:$0xff] %vm66, %v54
    %68 = vst.msk [vmem:[#allocation2 + $0x8] sm:$0xff] %vm66, %v55
    %69 = vst.msk [vmem:[#allocation2 + $0x10] sm:$0xff] %vm66, %v56
    %70 = vst.msk [vmem:[#allocation2 + $0x18] sm:$0xff] %vm66, %v57
    %vm71 = vcmask 261120
    %v73 = vsel %vm71, %v62, 0
    %v76 = vsel %vm71, %v63, 0
    %v79 = vsel %vm71, %v64, 0
    %v82 = vsel %vm71, %v65, 0
    %84 = vmatpush.msra.mxu0 0.0
    %85 = vmatpush.msra.mxu0 0.0
    %86 = vmatpush.msra.mxu0 0.0
    %87 = vmatpush.msra.mxu0 0.0
    %88 = vmatpush.msra.mxu0 0.0
    %89 = vmatpush.msra.mxu0 0.0
    %90 = vmatpush.msra.mxu0 0.0
    %91 = vmatpush.msra.mxu0 0.0
    %92 = vmatpush.msra.mxu0 0.0
    %93 = vmatpush.msra.mxu0 0.0
    %94 = vmatpush.msra.mxu0 0.0
    %95 = vmatpush.msra.mxu0 0.0
    %96 = vmatpush.msra.mxu0 %v57
    %97 = vmatpush.msra.mxu0 %v56
    %98 = vmatpush.msra.mxu0 %v55
    %99 = vmatpush.msra.mxu0 %v54
    %100 = vmatmul.f32.gmra.mxu0 %v73
    %v101 = vpop.f32.mrf.mxu0
    %v102 = vadd.f32 0.0, %v101
    %103 = vmatmul.f32.gmra.mxu0 %v76
    %v104 = vpop.f32.mrf.mxu0
    %v105 = vadd.f32 0.0, %v104
    %106 = vmatmul.f32.gmra.mxu0 %v79
    %v107 = vpop.f32.mrf.mxu0
    %v108 = vadd.f32 0.0, %v107
    %109 = vmatmul.f32.gmra.mxu0 %v82
    %v110 = vpop.f32.mrf.mxu0
    %v111 = vadd.f32 0.0, %v110
    %112 = vdwg.mxu0
    %117 = vrot.lane.b32.xlu0 %v102, 3
    %v118 = vpop.permute.xlu0 %117
    %119 = vrot.lane.b32.xlu0 %v105, 3
    %v120 = vpop.permute.xlu0 %119
    %121 = vrot.lane.b32.xlu0 %v108, 3
    %v122 = vpop.permute.xlu0 %121
    %123 = vrot.lane.b32.xlu0 %v111, 3
    %v124 = vpop.permute.xlu0 %123
    %vm129 = vcmask 48152
    %130 = vst.msk [vmem:[#allocation2] sm:$0xff] %vm129, %v118
    %131 = vst.msk [vmem:[#allocation2 + $0x8] sm:$0xff] %vm129, %v120
    %132 = vst.msk [vmem:[#allocation2 + $0x10] sm:$0xff] %vm129, %v122
    %133 = vst.msk [vmem:[#allocation2 + $0x18] sm:$0xff] %vm129, %v124
    %134 = vmatpush.msra.mxu0 0.0
    %135 = vmatpush.msra.mxu0 0.0
    %136 = vmatpush.msra.mxu0 0.0
    %137 = vmatpush.msra.mxu0 0.0
    %138 = vmatpush.msra.mxu0 0.0
    %139 = vmatpush.msra.mxu0 0.0
    %140 = vmatpush.msra.mxu0 0.0
    %141 = vmatpush.msra.mxu0 0.0
    %142 = vmatpush.msra.mxu0 0.0
    %143 = vmatpush.msra.mxu0 0.0
    %144 = vmatpush.msra.mxu0 0.0
    %145 = vmatpush.msra.mxu0 0.0
    %146 = vmatpush.msra.mxu0 %v111
    %147 = vmatpush.msra.mxu0 %v108
    %148 = vmatpush.msra.mxu0 %v105
    %149 = vmatpush.msra.mxu0 %v102
    %150 = vmatmul.f32.gmra.mxu0 %v73
    %v151 = vpop.f32.mrf.mxu0
    %v152 = vadd.f32 0.0, %v151
    %153 = vmatmul.f32.gmra.mxu0 %v76
    %v154 = vpop.f32.mrf.mxu0
    %v155 = vadd.f32 0.0, %v154
    %156 = vmatmul.f32.gmra.mxu0 %v79
    %v157 = vpop.f32.mrf.mxu0
    %v158 = vadd.f32 0.0, %v157
    %159 = vmatmul.f32.gmra.mxu0 %v82
    %v160 = vpop.f32.mrf.mxu0
    %v161 = vadd.f32 0.0, %v160
    %162 = vdwg.mxu0
    %v163 = vmul.f32 %v152, 2.0
    %v164 = vmul.f32 %v155, 2.0
    %v165 = vmul.f32 %v158, 2.0
    %v166 = vmul.f32 %v161, 2.0
    %v167 = vsub.f32 %v163, %v54
    %v168 = vsub.f32 %v164, %v55
    %v169 = vsub.f32 %v165, %v56
    %v170 = vsub.f32 %v166, %v57
    %175 = vrot.lane.b32.xlu0 %v167, 6
    %v176 = vpop.permute.xlu0 %175
    %177 = vrot.lane.b32.xlu0 %v168, 6
    %v178 = vpop.permute.xlu0 %177
    %179 = vrot.lane.b32.xlu0 %v169, 6
    %v180 = vpop.permute.xlu0 %179
    %181 = vrot.lane.b32.xlu0 %v170, 6
    %v182 = vpop.permute.xlu0 %181
    %vm187 = vcmask 72752
    %188 = vst.msk [vmem:[#allocation2] sm:$0xff] %vm187, %v176
    %189 = vst.msk [vmem:[#allocation2 + $0x8] sm:$0xff] %vm187, %v178
    %190 = vst.msk [vmem:[#allocation2 + $0x10] sm:$0xff] %vm187, %v180
    %191 = vst.msk [vmem:[#allocation2 + $0x18] sm:$0xff] %vm187, %v182
    %192 = vst.msk [vmem:[#allocation2 + $0x20] sm:$0xff] %vm66, %v58
    %193 = vst.msk [vmem:[#allocation2 + $0x28] sm:$0xff] %vm66, %v59
    %194 = vst.msk [vmem:[#allocation2 + $0x30] sm:$0xff] %vm66, %v60
    %195 = vst.msk [vmem:[#allocation2 + $0x38] sm:$0xff] %vm66, %v61
    %196 = vmatpush.msra.mxu0 0.0
    %197 = vmatpush.msra.mxu0 0.0
    %198 = vmatpush.msra.mxu0 0.0
    %199 = vmatpush.msra.mxu0 0.0
    %200 = vmatpush.msra.mxu0 0.0
    %201 = vmatpush.msra.mxu0 0.0
    %202 = vmatpush.msra.mxu0 0.0
    %203 = vmatpush.msra.mxu0 0.0
    %204 = vmatpush.msra.mxu0 0.0
    %205 = vmatpush.msra.mxu0 0.0
    %206 = vmatpush.msra.mxu0 0.0
    %207 = vmatpush.msra.mxu0 0.0
    %208 = vmatpush.msra.mxu0 %v61
    %209 = vmatpush.msra.mxu0 %v60
    %210 = vmatpush.msra.mxu0 %v59
    %211 = vmatpush.msra.mxu0 %v58
    %212 = vmatmul.f32.gmra.mxu0 %v73
    %v213 = vpop.f32.mrf.mxu0
    %v214 = vadd.f32 0.0, %v213
    %215 = vmatmul.f32.gmra.mxu0 %v76
    %v216 = vpop.f32.mrf.mxu0
    %v217 = vadd.f32 0.0, %v216
    %218 = vmatmul.f32.gmra.mxu0 %v79
    %v219 = vpop.f32.mrf.mxu0
    %v220 = vadd.f32 0.0, %v219
    %221 = vmatmul.f32.gmra.mxu0 %v82
    %v222 = vpop.f32.mrf.mxu0
    %v223 = vadd.f32 0.0, %v222
    %224 = vdwg.mxu0
    %229 = vrot.lane.b32.xlu0 %v214, 3
    %v230 = vpop.permute.xlu0 %229
    %231 = vrot.lane.b32.xlu0 %v217, 3
    %v232 = vpop.permute.xlu0 %231
    %233 = vrot.lane.b32.xlu0 %v220, 3
    %v234 = vpop.permute.xlu0 %233
    %235 = vrot.lane.b32.xlu0 %v223, 3
    %v236 = vpop.permute.xlu0 %235
    %241 = vst.msk [vmem:[#allocation2 + $0x20] sm:$0xff] %vm129, %v230
    %242 = vst.msk [vmem:[#allocation2 + $0x28] sm:$0xff] %vm129, %v232
    %243 = vst.msk [vmem:[#allocation2 + $0x30] sm:$0xff] %vm129, %v234
    %244 = vst.msk [vmem:[#allocation2 + $0x38] sm:$0xff] %vm129, %v236
    %245 = vmatpush.msra.mxu0 0.0
    %246 = vmatpush.msra.mxu0 0.0
    %247 = vmatpush.msra.mxu0 0.0
    %248 = vmatpush.msra.mxu0 0.0
    %249 = vmatpush.msra.mxu0 0.0
    %250 = vmatpush.msra.mxu0 0.0
    %251 = vmatpush.msra.mxu0 0.0
    %252 = vmatpush.msra.mxu0 0.0
    %253 = vmatpush.msra.mxu0 0.0
    %254 = vmatpush.msra.mxu0 0.0
    %255 = vmatpush.msra.mxu0 0.0
    %256 = vmatpush.msra.mxu0 0.0
    %257 = vmatpush.msra.mxu0 %v223
    %258 = vmatpush.msra.mxu0 %v220
    %259 = vmatpush.msra.mxu0 %v217
    %260 = vmatpush.msra.mxu0 %v214
    %261 = vmatmul.f32.gmra.mxu0 %v73
    %v262 = vpop.f32.mrf.mxu0
    %v263 = vadd.f32 0.0, %v262
    %264 = vmatmul.f32.gmra.mxu0 %v76
    %v265 = vpop.f32.mrf.mxu0
    %v266 = vadd.f32 0.0, %v265
    %267 = vmatmul.f32.gmra.mxu0 %v79
    %v268 = vpop.f32.mrf.mxu0
    %v269 = vadd.f32 0.0, %v268
    %270 = vmatmul.f32.gmra.mxu0 %v82
    %v271 = vpop.f32.mrf.mxu0
    %v272 = vadd.f32 0.0, %v271
    %273 = vdwg.mxu0
    %v274 = vmul.f32 %v263, 2.0
    %v275 = vmul.f32 %v266, 2.0
    %v276 = vmul.f32 %v269, 2.0
    %v277 = vmul.f32 %v272, 2.0
    %v278 = vsub.f32 %v274, %v58
    %v279 = vsub.f32 %v275, %v59
    %v280 = vsub.f32 %v276, %v60
    %v281 = vsub.f32 %v277, %v61
    %286 = vrot.lane.b32.xlu0 %v278, 6
    %v287 = vpop.permute.xlu0 %286
    %288 = vrot.lane.b32.xlu0 %v279, 6
    %v289 = vpop.permute.xlu0 %288
    %290 = vrot.lane.b32.xlu0 %v280, 6
    %v291 = vpop.permute.xlu0 %290
    %292 = vrot.lane.b32.xlu0 %v281, 6
    %v293 = vpop.permute.xlu0 %292
    %298 = vst.msk [vmem:[#allocation2 + $0x20] sm:$0xff] %vm187, %v287
    %299 = vst.msk [vmem:[#allocation2 + $0x28] sm:$0xff] %vm187, %v289
    %300 = vst.msk [vmem:[#allocation2 + $0x30] sm:$0xff] %vm187, %v291
    %301 = vst.msk [vmem:[#allocation2 + $0x38] sm:$0xff] %vm187, %v293
    %v302 = vld [vmem:[#allocation2] sm:$0xff]
    %v303 = vld [vmem:[#allocation2 + $0x8] sm:$0xff]
    %v304 = vld [vmem:[#allocation2 + $0x10] sm:$0xff]
    %v305 = vld [vmem:[#allocation2 + $0x18] sm:$0xff]
    %v306 = vld [vmem:[#allocation2 + $0x20] sm:$0xff]
    %v307 = vld [vmem:[#allocation2 + $0x28] sm:$0xff]
    %v308 = vld [vmem:[#allocation2 + $0x30] sm:$0xff]
    %v309 = vld [vmem:[#allocation2 + $0x38] sm:$0xff]
    %v310 = vld [vmem:[%s2] sm:$0xff]
    %v311 = vld [vmem:[%s2 + $0x8] sm:$0x1]
    %v312 = vld [vmem:[%s3] sm:$0x1]
    %v314 = vperm.slane %v312, 0
    %vm316 = vcmask 72704
    %v318 = vsel %vm316, %v302, 0
    %v321 = vsel %vm316, %v303, 0
    %v324 = vsel %vm316, %v304, 0
    %v327 = vsel %vm316, %v305, 0
    %v330 = vsel %vm316, %v306, 0
    %v333 = vsel %vm316, %v307, 0
    %v336 = vsel %vm316, %v308, 0
    %v339 = vsel %vm316, %v309, 0
    %vm341 = vcmask 1040384
    %v343 = vsel %vm341, %v311, 0
    %345 = vmatpush.msra.mxu0 0.0
    %346 = vmatpush.msra.mxu0 0.0
    %347 = vmatpush.msra.mxu0 0.0
    %348 = vmatpush.msra.mxu0 0.0
    %349 = vmatpush.msra.mxu0 0.0
    %350 = vmatpush.msra.mxu0 0.0
    %351 = vmatpush.msra.mxu0 0.0
    %352 = vmatpush.msra.mxu0 0.0
    %353 = vmatpush.msra.mxu0 0.0
    %354 = vmatpush.msra.mxu0 0.0
    %355 = vmatpush.msra.mxu0 0.0
    %356 = vmatpush.msra.mxu0 0.0
    %357 = vmatpush.msra.mxu0 0.0
    %358 = vmatpush.msra.mxu0 0.0
    %359 = vmatpush.msra.mxu0 %v343
    %360 = vmatpush.msra.mxu0 %v310
    %361 = vmatmul.f32.gmra.mxu0 %v318
    %v362 = vpop.f32.mrf.mxu0
    %v363 = vadd.f32 %v314, %v362
    %364 = vmatmul.f32.gmra.mxu0 %v321
    %v365 = vpop.f32.mrf.mxu0
    %v366 = vadd.f32 %v314, %v365
    %367 = vmatmul.f32.gmra.mxu0 %v324
    %v368 = vpop.f32.mrf.mxu0
    %v369 = vadd.f32 %v314, %v368
    %370 = vmatmul.f32.gmra.mxu0 %v327
    %v371 = vpop.f32.mrf.mxu0
    %v372 = vadd.f32 %v314, %v371
    %373 = vmatmul.f32.gmra.mxu0 %v330
    %v374 = vpop.f32.mrf.mxu0
    %v375 = vadd.f32 %v314, %v374
    %376 = vmatmul.f32.gmra.mxu0 %v333
    %v377 = vpop.f32.mrf.mxu0
    %v378 = vadd.f32 %v314, %v377
    %379 = vmatmul.f32.gmra.mxu0 %v336
    %v380 = vpop.f32.mrf.mxu0
    %v381 = vadd.f32 %v314, %v380
    %382 = vmatmul.f32.gmra.mxu0 %v339
    %v383 = vpop.f32.mrf.mxu0
    %v384 = vadd.f32 %v314, %v383
    %385 = vdwg.mxu0
    %vm386 = vcmp.gt.f32.partialorder %v363, 0.0
    %vm387 = vcmp.gt.f32.partialorder %v366, 0.0
    %vm388 = vcmp.gt.f32.partialorder %v369, 0.0
    %vm389 = vcmp.gt.f32.partialorder %v372, 0.0
    %vm390 = vcmp.gt.f32.partialorder %v375, 0.0
    %vm391 = vcmp.gt.f32.partialorder %v378, 0.0
    %vm392 = vcmp.gt.f32.partialorder %v381, 0.0
    %vm393 = vcmp.gt.f32.partialorder %v384, 0.0
    %v394 = vmin.f32 %v363, 0.0
    %v395 = vmin.f32 %v366, 0.0
    %v396 = vmin.f32 %v369, 0.0
    %v397 = vmin.f32 %v372, 0.0
    %v398 = vmin.f32 %v375, 0.0
    %v399 = vmin.f32 %v378, 0.0
    %v400 = vmin.f32 %v381, 0.0
    %v401 = vmin.f32 %v384, 0.0
    %v402 = vmul.f32 %v394, 1.442695
    %v403 = vpow.pop %v402
    %v404 = vmul.f32 %v395, 1.442695
    %v405 = vpow.pop %v404
    %v406 = vmul.f32 %v396, 1.442695
    %v407 = vpow.pop %v406
    %v408 = vmul.f32 %v397, 1.442695
    %v409 = vpow.pop %v408
    %v410 = vmul.f32 %v398, 1.442695
    %v411 = vpow.pop %v410
    %v412 = vmul.f32 %v399, 1.442695
    %v413 = vpow.pop %v412
    %v414 = vmul.f32 %v400, 1.442695
    %v415 = vpow.pop %v414
    %v416 = vmul.f32 %v401, 1.442695
    %v417 = vpow.pop %v416
    %v418 = vsub.f32 %v403, 1.0
    %v419 = vsub.f32 %v405, 1.0
    %v420 = vsub.f32 %v407, 1.0
    %v421 = vsub.f32 %v409, 1.0
    %v422 = vsub.f32 %v411, 1.0
    %v423 = vsub.f32 %v413, 1.0
    %v424 = vsub.f32 %v415, 1.0
    %v425 = vsub.f32 %v417, 1.0
    %v426 = vsel %vm386, %v363, %v418
    %v427 = vsel %vm387, %v366, %v419
    %v428 = vsel %vm388, %v369, %v420
    %v429 = vsel %vm389, %v372, %v421
    %v430 = vsel %vm390, %v375, %v422
    %v431 = vsel %vm391, %v378, %v423
    %v432 = vsel %vm392, %v381, %v424
    %v433 = vsel %vm393, %v384, %v425
    %v434 = vld [vmem:[%s4] sm:$0xff]
    %v435 = vld [vmem:[%s4 + $0x8] sm:$0xff]
    %v437 = vsel %vm71, %v434, 0
    %v440 = vsel %vm71, %v435, 0
    %442 = vmatpush.msra.mxu0 0.0
    %443 = vmatpush.msra.mxu0 0.0
    %444 = vmatpush.msra.mxu0 0.0
    %445 = vmatpush.msra.mxu0 0.0
    %446 = vmatpush.msra.mxu0 0.0
    %447 = vmatpush.msra.mxu0 0.0
    %448 = vmatpush.msra.mxu0 0.0
    %449 = vmatpush.msra.mxu0 0.0
    %450 = vmatpush.msra.mxu0 0.0
    %451 = vmatpush.msra.mxu0 0.0
    %452 = vmatpush.msra.mxu0 0.0
    %453 = vmatpush.msra.mxu0 0.0
    %454 = vmatpush.msra.mxu0 %v429
    %455 = vmatpush.msra.mxu0 %v428
    %456 = vmatpush.msra.mxu0 %v427
    %457 = vmatpush.msra.mxu0 %v426
    %458 = vmatmul.f32.gmra.mxu0 %v437
    %v459 = vpop.f32.mrf.mxu0
    %v460 = vadd.f32 0.0, %v459
    %461 = vmatmul.f32.gmra.mxu0 %v440
    %v462 = vpop.f32.mrf.mxu0
    %v463 = vadd.f32 0.0, %v462
    %464 = vdwg.mxu0
    %465 = vmatpush.msra.mxu0 0.0
    %466 = vmatpush.msra.mxu0 0.0
    %467 = vmatpush.msra.mxu0 0.0
    %468 = vmatpush.msra.mxu0 0.0
    %469 = vmatpush.msra.mxu0 0.0
    %470 = vmatpush.msra.mxu0 0.0
    %471 = vmatpush.msra.mxu0 0.0
    %472 = vmatpush.msra.mxu0 0.0
    %473 = vmatpush.msra.mxu0 0.0
    %474 = vmatpush.msra.mxu0 0.0
    %475 = vmatpush.msra.mxu0 0.0
    %476 = vmatpush.msra.mxu0 0.0
    %477 = vmatpush.msra.mxu0 %v433
    %478 = vmatpush.msra.mxu0 %v432
    %479 = vmatpush.msra.mxu0 %v431
    %480 = vmatpush.msra.mxu0 %v430
    %481 = vmatmul.f32.gmra.mxu0 %v437
    %v482 = vpop.f32.mrf.mxu0
    %v483 = vadd.f32 0.0, %v482
    %484 = vmatmul.f32.gmra.mxu0 %v440
    %v485 = vpop.f32.mrf.mxu0
    %v486 = vadd.f32 0.0, %v485
    %487 = vdwg.mxu0
    %v488 = vld [vmem:[%s5] sm:$0xff]
    %v489 = vld [vmem:[%s5 + $0x8] sm:$0xff]
    %vm490 = vcmask 130048
    %491 = vst.msk [vmem:[#allocation3] sm:$0xff] %vm490, %v460
    %492 = vst.msk [vmem:[#allocation3 + $0x8] sm:$0xff] %vm490, %v463
    %v494 = vsel %vm490, %v488, 0
    %v497 = vsel %vm490, %v489, 0
    %499 = vmatpush.msra.mxu0 0.0
    %500 = vmatpush.msra.mxu0 0.0
    %501 = vmatpush.msra.mxu0 0.0
    %502 = vmatpush.msra.mxu0 0.0
    %503 = vmatpush.msra.mxu0 0.0
    %504 = vmatpush.msra.mxu0 0.0
    %505 = vmatpush.msra.mxu0 0.0
    %506 = vmatpush.msra.mxu0 0.0
    %507 = vmatpush.msra.mxu0 0.0
    %508 = vmatpush.msra.mxu0 0.0
    %509 = vmatpush.msra.mxu0 0.0
    %510 = vmatpush.msra.mxu0 0.0
    %511 = vmatpush.msra.mxu0 0.0
    %512 = vmatpush.msra.mxu0 0.0
    %513 = vmatpush.msra.mxu0 %v463
    %514 = vmatpush.msra.mxu0 %v460
    %515 = vmatmul.f32.gmra.mxu0 %v494
    %v516 = vpop.f32.mrf.mxu0
    %v517 = vadd.f32 0.0, %v516
    %518 = vmatmul.f32.gmra.mxu0 %v497
    %v519 = vpop.f32.mrf.mxu0
    %v520 = vadd.f32 0.0, %v519
    %521 = vdwg.mxu0
    %524 = vrot.lane.b32.xlu0 %v517, 16
    %v525 = vpop.permute.xlu0 %524
    %526 = vrot.lane.b32.xlu0 %v520, 16
    %v527 = vpop.permute.xlu0 %526
    %vm530 = vcmask 261248
    %531 = vst.msk [vmem:[#allocation3] sm:$0xff] %vm530, %v525
    %532 = vst.msk [vmem:[#allocation3 + $0x8] sm:$0xff] %vm530, %v527
    %533 = vmatpush.msra.mxu0 0.0
    %534 = vmatpush.msra.mxu0 0.0
    %535 = vmatpush.msra.mxu0 0.0
    %536 = vmatpush.msra.mxu0 0.0
    %537 = vmatpush.msra.mxu0 0.0
    %538 = vmatpush.msra.mxu0 0.0
    %539 = vmatpush.msra.mxu0 0.0
    %540 = vmatpush.msra.mxu0 0.0
    %541 = vmatpush.msra.mxu0 0.0
    %542 = vmatpush.msra.mxu0 0.0
    %543 = vmatpush.msra.mxu0 0.0
    %544 = vmatpush.msra.mxu0 0.0
    %545 = vmatpush.msra.mxu0 0.0
    %546 = vmatpush.msra.mxu0 0.0
    %547 = vmatpush.msra.mxu0 %v520
    %548 = vmatpush.msra.mxu0 %v517
    %549 = vmatmul.f32.gmra.mxu0 %v494
    %v550 = vpop.f32.mrf.mxu0
    %v551 = vadd.f32 0.0, %v550
    %552 = vmatmul.f32.gmra.mxu0 %v497
    %v553 = vpop.f32.mrf.mxu0
    %v554 = vadd.f32 0.0, %v553
    %555 = vdwg.mxu0
    %v556 = vmul.f32 %v551, 2.0
    %v557 = vmul.f32 %v554, 2.0
    %v558 = vsub.f32 %v556, %v460
    %v559 = vsub.f32 %v557, %v463
    %562 = vrot.lane.b32.xlu0 %v558, 32
    %v563 = vpop.permute.xlu0 %562
    %564 = vrot.lane.b32.xlu0 %v559, 32
    %v565 = vpop.permute.xlu0 %564
    %vm568 = vcmask 392448
    %569 = vst.msk [vmem:[#allocation3] sm:$0xff] %vm568, %v563
    %570 = vst.msk [vmem:[#allocation3 + $0x8] sm:$0xff] %vm568, %v565
    %571 = vst.msk [vmem:[#allocation3 + $0x10] sm:$0xff] %vm490, %v483
    %572 = vst.msk [vmem:[#allocation3 + $0x18] sm:$0xff] %vm490, %v486
    %573 = vmatpush.msra.mxu0 0.0
    %574 = vmatpush.msra.mxu0 0.0
    %575 = vmatpush.msra.mxu0 0.0
    %576 = vmatpush.msra.mxu0 0.0
    %577 = vmatpush.msra.mxu0 0.0
    %578 = vmatpush.msra.mxu0 0.0
    %579 = vmatpush.msra.mxu0 0.0
    %580 = vmatpush.msra.mxu0 0.0
    %581 = vmatpush.msra.mxu0 0.0
    %582 = vmatpush.msra.mxu0 0.0
    %583 = vmatpush.msra.mxu0 0.0
    %584 = vmatpush.msra.mxu0 0.0
    %585 = vmatpush.msra.mxu0 0.0
    %586 = vmatpush.msra.mxu0 0.0
    %587 = vmatpush.msra.mxu0 %v486
    %588 = vmatpush.msra.mxu0 %v483
    %589 = vmatmul.f32.gmra.mxu0 %v494
    %v590 = vpop.f32.mrf.mxu0
    %v591 = vadd.f32 0.0, %v590
    %592 = vmatmul.f32.gmra.mxu0 %v497
    %v593 = vpop.f32.mrf.mxu0
    %v594 = vadd.f32 0.0, %v593
    %595 = vdwg.mxu0
    %598 = vrot.lane.b32.xlu0 %v591, 16
    %v599 = vpop.permute.xlu0 %598
    %600 = vrot.lane.b32.xlu0 %v594, 16
    %v601 = vpop.permute.xlu0 %600
    %604 = vst.msk [vmem:[#allocation3 + $0x10] sm:$0xff] %vm530, %v599
    %605 = vst.msk [vmem:[#allocation3 + $0x18] sm:$0xff] %vm530, %v601
    %606 = vmatpush.msra.mxu0 0.0
    %607 = vmatpush.msra.mxu0 0.0
    %608 = vmatpush.msra.mxu0 0.0
    %609 = vmatpush.msra.mxu0 0.0
    %610 = vmatpush.msra.mxu0 0.0
    %611 = vmatpush.msra.mxu0 0.0
    %612 = vmatpush.msra.mxu0 0.0
    %613 = vmatpush.msra.mxu0 0.0
    %614 = vmatpush.msra.mxu0 0.0
    %615 = vmatpush.msra.mxu0 0.0
    %616 = vmatpush.msra.mxu0 0.0
    %617 = vmatpush.msra.mxu0 0.0
    %618 = vmatpush.msra.mxu0 0.0
    %619 = vmatpush.msra.mxu0 0.0
    %620 = vmatpush.msra.mxu0 %v594
    %621 = vmatpush.msra.mxu0 %v591
    %622 = vmatmul.f32.gmra.mxu0 %v494
    %v623 = vpop.f32.mrf.mxu0
    %v624 = vadd.f32 0.0, %v623
    %625 = vmatmul.f32.gmra.mxu0 %v497
    %v626 = vpop.f32.mrf.mxu0
    %v627 = vadd.f32 0.0, %v626
    %628 = vdwg.mxu0
    %v629 = vmul.f32 %v624, 2.0
    %v630 = vmul.f32 %v627, 2.0
    %v631 = vsub.f32 %v629, %v483
    %v632 = vsub.f32 %v630, %v486
    %635 = vrot.lane.b32.xlu0 %v631, 32
    %v636 = vpop.permute.xlu0 %635
    %637 = vrot.lane.b32.xlu0 %v632, 32
    %v638 = vpop.permute.xlu0 %637
    %641 = vst.msk [vmem:[#allocation3 + $0x10] sm:$0xff] %vm568, %v636
    %642 = vst.msk [vmem:[#allocation3 + $0x18] sm:$0xff] %vm568, %v638
    %v643 = vld [vmem:[#allocation3] sm:$0xff]
    %v644 = vld [vmem:[#allocation3 + $0x8] sm:$0xff]
    %v645 = vld [vmem:[#allocation3 + $0x10] sm:$0xff]
    %v646 = vld [vmem:[#allocation3 + $0x18] sm:$0xff]
    %v647 = vld [vmem:[%s6] sm:$0xff]
    %v648 = vld [vmem:[%s6 + $0x8] sm:$0xff]
    %v649 = vld [vmem:[%s6 + $0x10] sm:$0xff]
    %v650 = vld [vmem:[%s6 + $0x18] sm:$0xff]
    %v651 = vld [vmem:[%s6 + $0x20] sm:$0xff]
    %v652 = vld [vmem:[%s6 + $0x28] sm:$0xff]
    %v653 = vld [vmem:[%s7] sm:$0x1]
    %v655 = vperm.slane %v653, 0
    %vm657 = vcmask 392192
    %v659 = vsel %vm657, %v643, 0
    %v662 = vsel %vm657, %v644, 0
    %v665 = vsel %vm657, %v645, 0
    %v668 = vsel %vm657, %v646, 0
    %670 = vmatpush.msra.mxu0 0.0
    %671 = vmatpush.msra.mxu0 0.0
    %672 = vmatpush.msra.mxu0 0.0
    %673 = vmatpush.msra.mxu0 0.0
    %674 = vmatpush.msra.mxu0 0.0
    %675 = vmatpush.msra.mxu0 0.0
    %676 = vmatpush.msra.mxu0 0.0
    %677 = vmatpush.msra.mxu0 0.0
    %678 = vmatpush.msra.mxu0 0.0
    %679 = vmatpush.msra.mxu0 0.0
    %680 = vmatpush.msra.mxu0 %v652
    %681 = vmatpush.msra.mxu0 %v651
    %682 = vmatpush.msra.mxu0 %v650
    %683 = vmatpush.msra.mxu0 %v649
    %684 = vmatpush.msra.mxu0 %v648
    %685 = vmatpush.msra.mxu0 %v647
    %686 = vmatmul.f32.gmra.mxu0 %v659
    %v687 = vpop.f32.mrf.mxu0
    %v688 = vadd.f32 %v655, %v687
    %689 = vmatmul.f32.gmra.mxu0 %v662
    %v690 = vpop.f32.mrf.mxu0
    %v691 = vadd.f32 %v655, %v690
    %692 = vmatmul.f32.gmra.mxu0 %v665
    %v693 = vpop.f32.mrf.mxu0
    %v694 = vadd.f32 %v655, %v693
    %695 = vmatmul.f32.gmra.mxu0 %v668
    %v696 = vpop.f32.mrf.mxu0
    %v697 = vadd.f32 %v655, %v696
    %698 = vdwg.mxu0
    %vm699 = vcmp.gt.f32.partialorder %v688, 0.0
    %vm700 = vcmp.gt.f32.partialorder %v691, 0.0
    %vm701 = vcmp.gt.f32.partialorder %v694, 0.0
    %vm702 = vcmp.gt.f32.partialorder %v697, 0.0
    %v703 = vmin.f32 %v688, 0.0
    %v704 = vmin.f32 %v691, 0.0
    %v705 = vmin.f32 %v694, 0.0
    %v706 = vmin.f32 %v697, 0.0
    %v707 = vmul.f32 %v703, 1.442695
    %v708 = vpow.pop %v707
    %v709 = vmul.f32 %v704, 1.442695
    %v710 = vpow.pop %v709
    %v711 = vmul.f32 %v705, 1.442695
    %v712 = vpow.pop %v711
    %v713 = vmul.f32 %v706, 1.442695
    %v714 = vpow.pop %v713
    %v715 = vsub.f32 %v708, 1.0
    %v716 = vsub.f32 %v710, 1.0
    %v717 = vsub.f32 %v712, 1.0
    %v718 = vsub.f32 %v714, 1.0
    %v719 = vsel %vm699, %v688, %v715
    %v720 = vsel %vm700, %v691, %v716
    %v721 = vsel %vm701, %v694, %v717
    %v722 = vsel %vm702, %v697, %v718
    %v723 = vld [vmem:[%s8] sm:$0xff]
    %v725 = vsel %vm490, %v723, 0
    %727 = vmatpush.msra.mxu0 0.0
    %728 = vmatpush.msra.mxu0 0.0
    %729 = vmatpush.msra.mxu0 0.0
    %730 = vmatpush.msra.mxu0 0.0
    %731 = vmatpush.msra.mxu0 0.0
    %732 = vmatpush.msra.mxu0 0.0
    %733 = vmatpush.msra.mxu0 0.0
    %734 = vmatpush.msra.mxu0 0.0
    %735 = vmatpush.msra.mxu0 0.0
    %736 = vmatpush.msra.mxu0 0.0
    %737 = vmatpush.msra.mxu0 0.0
    %738 = vmatpush.msra.mxu0 0.0
    %739 = vmatpush.msra.mxu0 0.0
    %740 = vmatpush.msra.mxu0 0.0
    %741 = vmatpush.msra.mxu0 %v720
    %742 = vmatpush.msra.mxu0 %v719
    %743 = vmatmul.f32.gmra.mxu0 %v725
    %v744 = vpop.f32.mrf.mxu0
    %v745 = vadd.f32 0.0, %v744
    %746 = vdwg.mxu0
    %747 = vmatpush.msra.mxu0 0.0
    %748 = vmatpush.msra.mxu0 0.0
    %749 = vmatpush.msra.mxu0 0.0
    %750 = vmatpush.msra.mxu0 0.0
    %751 = vmatpush.msra.mxu0 0.0
    %752 = vmatpush.msra.mxu0 0.0
    %753 = vmatpush.msra.mxu0 0.0
    %754 = vmatpush.msra.mxu0 0.0
    %755 = vmatpush.msra.mxu0 0.0
    %756 = vmatpush.msra.mxu0 0.0
    %757 = vmatpush.msra.mxu0 0.0
    %758 = vmatpush.msra.mxu0 0.0
    %759 = vmatpush.msra.mxu0 0.0
    %760 = vmatpush.msra.mxu0 0.0
    %761 = vmatpush.msra.mxu0 %v722
    %762 = vmatpush.msra.mxu0 %v721
    %763 = vmatmul.f32.gmra.mxu0 %v725
    %v764 = vpop.f32.mrf.mxu0
    %v765 = vadd.f32 0.0, %v764
    %766 = vdwg.mxu0
    %vm767 = vcmask 122880
    %768 = vst.msk [vmem:[#allocation4] sm:$0x1] %vm767, %v745
    %770 = vrot.lane.b32.xlu0 %v745, 16
    %v771 = vpop.permute.xlu0 %770
    %vm773 = vcmask 255105
    %774 = vst.msk [vmem:[#allocation4 - $0x1] sm:$0x2] %vm773, %v771
    %775 = vrot.lane.b32.xlu0 %v745, 32
    %v776 = vpop.permute.xlu0 %775
    %vm778 = vcmask 387330
    %779 = vst.msk [vmem:[#allocation4 - $0x2] sm:$0x4] %vm778, %v776
    %780 = vrot.lane.b32.xlu0 %v745, 48
    %v781 = vpop.permute.xlu0 %780
    %vm783 = vcmask 519555
    %784 = vst.msk [vmem:[#allocation4 - $0x3] sm:$0x8] %vm783, %v781
    %785 = vrot.lane.b32.xlu0 %v745, 64
    %v786 = vpop.permute.xlu0 %785
    %vm788 = vcmask 651780
    %789 = vst.msk [vmem:[#allocation4 - $0x4] sm:$0x10] %vm788, %v786
    %790 = vrot.lane.b32.xlu0 %v745, 80
    %v791 = vpop.permute.xlu0 %790
    %vm793 = vcmask 784005
    %794 = vst.msk [vmem:[#allocation4 - $0x5] sm:$0x20] %vm793, %v791
    %795 = vrot.lane.b32.xlu0 %v745, 96
    %v796 = vpop.permute.xlu0 %795
    %vm798 = vcmask 916230
    %799 = vst.msk [vmem:[#allocation4 - $0x6] sm:$0x40] %vm798, %v796
    %800 = vrot.lane.b32.xlu0 %v745, 112
    %v801 = vpop.permute.xlu0 %800
    %vm803 = vcmask 1048455
    %804 = vst.msk [vmem:[#allocation4 - $0x7] sm:$0x80] %vm803, %v801
    %805 = vst.msk [vmem:[#allocation4 + $0x1] sm:$0x1] %vm767, %v765
    %807 = vrot.lane.b32.xlu0 %v765, 16
    %v808 = vpop.permute.xlu0 %807
    %810 = vst.msk [vmem:[#allocation4] sm:$0x2] %vm773, %v808
    %811 = vrot.lane.b32.xlu0 %v765, 32
    %v812 = vpop.permute.xlu0 %811
    %814 = vst.msk [vmem:[#allocation4 - $0x1] sm:$0x4] %vm778, %v812
    %815 = vrot.lane.b32.xlu0 %v765, 48
    %v816 = vpop.permute.xlu0 %815
    %818 = vst.msk [vmem:[#allocation4 - $0x2] sm:$0x8] %vm783, %v816
    %819 = vrot.lane.b32.xlu0 %v765, 64
    %v820 = vpop.permute.xlu0 %819
    %822 = vst.msk [vmem:[#allocation4 - $0x3] sm:$0x10] %vm788, %v820
    %823 = vrot.lane.b32.xlu0 %v765, 80
    %v824 = vpop.permute.xlu0 %823
    %826 = vst.msk [vmem:[#allocation4 - $0x4] sm:$0x20] %vm793, %v824
    %827 = vrot.lane.b32.xlu0 %v765, 96
    %v828 = vpop.permute.xlu0 %827
    %830 = vst.msk [vmem:[#allocation4 - $0x5] sm:$0x40] %vm798, %v828
    %831 = vrot.lane.b32.xlu0 %v765, 112
    %v832 = vpop.permute.xlu0 %831
    %834 = vst.msk [vmem:[#allocation4 - $0x6] sm:$0x80] %vm803, %v832
    %v835 = vld [vmem:[#allocation4] sm:$0x3]
    %v836 = vld [vmem:[%s9] sm:$0xff]
    %v837 = vld [vmem:[%s9 + $0x8] sm:$0xff]
    %v838 = vld [vmem:[%s9 + $0x10] sm:$0xff]
    %v839 = vld [vmem:[%s9 + $0x18] sm:$0xff]
    %v840 = vld [vmem:[%s9 + $0x20] sm:$0xff]
    %v841 = vld [vmem:[%s9 + $0x28] sm:$0xff]
    %v842 = vld [vmem:[%s9 + $0x30] sm:$0xff]
    %v843 = vld [vmem:[%s9 + $0x38] sm:$0xff]
    %v844 = vld [vmem:[%s9 + $0x40] sm:$0xff]
    %v845 = vld [vmem:[%s9 + $0x48] sm:$0xff]
    %v846 = vld [vmem:[%s9 + $0x50] sm:$0xff]
    %v847 = vld [vmem:[%s9 + $0x58] sm:$0xff]
    %v848 = vld [vmem:[%s9 + $0x60] sm:$0xff]
    %v849 = vld [vmem:[%s9 + $0x68] sm:$0xff]
    %v850 = vld [vmem:[%s9 + $0x70] sm:$0xff]
    %v851 = vld [vmem:[%s9 + $0x78] sm:$0xff]
    %v852 = vld [vmem:[%s10] sm:$0x1]
    %v854 = vperm.slane %v852, 0
    %856 = vmatpush.msra.mxu0 %v851
    %857 = vmatpush.msra.mxu0 %v850
    %858 = vmatpush.msra.mxu0 %v849
    %859 = vmatpush.msra.mxu0 %v848
    %860 = vmatpush.msra.mxu0 %v847
    %861 = vmatpush.msra.mxu0 %v846
    %862 = vmatpush.msra.mxu0 %v845
    %863 = vmatpush.msra.mxu0 %v844
    %864 = vmatpush.msra.mxu0 %v843
    %865 = vmatpush.msra.mxu0 %v842
    %866 = vmatpush.msra.mxu0 %v841
    %867 = vmatpush.msra.mxu0 %v840
    %868 = vmatpush.msra.mxu0 %v839
    %869 = vmatpush.msra.mxu0 %v838
    %870 = vmatpush.msra.mxu0 %v837
    %871 = vmatpush.msra.mxu0 %v836
    %872 = vmatmul.f32.gmra.mxu0 %v835
    %v873 = vpop.f32.mrf.mxu0
    %v874 = vadd.f32 %v854, %v873
    %875 = vdwg.mxu0
    %v876 = vld [vmem:[%s11] sm:$0xff]
    %v877 = vld [vmem:[%s12] sm:$0x1]
    %v879 = vperm.slane %v877, 0
    %vm881 = vcmask 64512
    %v883 = vsel %vm881, %v874, 0
    %885 = vmatpush.msra.mxu0 0.0
    %886 = vmatpush.msra.mxu0 0.0
    %887 = vmatpush.msra.mxu0 0.0
    %888 = vmatpush.msra.mxu0 0.0
    %889 = vmatpush.msra.mxu0 0.0
    %890 = vmatpush.msra.mxu0 0.0
    %891 = vmatpush.msra.mxu0 0.0
    %892 = vmatpush.msra.mxu0 0.0
    %893 = vmatpush.msra.mxu0 0.0
    %894 = vmatpush.msra.mxu0 0.0
    %895 = vmatpush.msra.mxu0 0.0
    %896 = vmatpush.msra.mxu0 0.0
    %897 = vmatpush.msra.mxu0 0.0
    %898 = vmatpush.msra.mxu0 0.0
    %899 = vmatpush.msra.mxu0 0.0
    %900 = vmatpush.msra.mxu0 %v876
    %901 = vmatmul.f32.gmra.mxu0 %v883
    %v902 = vpop.f32.mrf.mxu0
    %v903 = vadd.f32 %v879, %v902
    %904 = vdwg.mxu0
    %v905 = vld [vmem:[%s13] sm:$0xff]
    %v906 = vld [vmem:[%s14] sm:$0x1]
    %v908 = vperm.slane %v906, 0
    %910 = vmatpush.msra.mxu0 0.0
    %911 = vmatpush.msra.mxu0 0.0
    %912 = vmatpush.msra.mxu0 0.0
    %913 = vmatpush.msra.mxu0 0.0
    %914 = vmatpush.msra.mxu0 0.0
    %915 = vmatpush.msra.mxu0 0.0
    %916 = vmatpush.msra.mxu0 0.0
    %917 = vmatpush.msra.mxu0 0.0
    %918 = vmatpush.msra.mxu0 0.0
    %919 = vmatpush.msra.mxu0 0.0
    %920 = vmatpush.msra.mxu0 0.0
    %921 = vmatpush.msra.mxu0 0.0
    %922 = vmatpush.msra.mxu0 0.0
    %923 = vmatpush.msra.mxu0 0.0
    %924 = vmatpush.msra.mxu0 0.0
    %925 = vmatpush.msra.mxu0 %v905
    %926 = vmatmul.f32.gmra.mxu0 %v883
    %v927 = vpop.f32.mrf.mxu0
    %v928 = vadd.f32 %v908, %v927
    %929 = vdwg.mxu0
    %vm930 = vcmask 25600
    %931 = vst.msk [vmem:[#allocation5] sm:$0x3] %vm930, %v903
    %v932 = vmul.f32 %v928, 0.5
    %v933 = vmul.f32 %v932, 1.442695
    %v934 = vpow.pop %v933
    %935 = vst.msk [vmem:[#allocation7] sm:$0x3] %vm930, %v934
    // Predicated region
    $region62: #{tpu_custom_call.1} parent=1 // pred_check
      _
    $region63: #{tpu_custom_call.1} parent=1 // pred_check_branch
      %937 = sbr.rel (0) target = $region65
    $region64: #{tpu_custom_call.1} parent=1 // pred_region
      %939 = vsyncadd [#allocation6], 0
      %s941 = sshll.u32 [#allocation5], 4
      %s942 = int_to_ptr.vmem [resolvable:$true] %s941
      %s943 = sshll.u32 %s15, 4
      %s944 = int_to_ptr.hbm [resolvable:$true] %s943
      %946 = dma.vmem_to_hbm [thread:$0]  %s942, 32, %s944, [#allocation6]
    $region65: #{tpu_custom_call.1} parent=1 // pred_fallthru
      _
    // Predicated region
    $region66: #{tpu_custom_call.1} parent=1 // pred_check
      _
    $region67: #{tpu_custom_call.1} parent=1 // pred_check_branch
      %948 = sbr.rel (0) target = $region69
    $region68: #{tpu_custom_call.1} parent=1 // pred_region
      %950 = vsyncadd [#allocation8], 0
      %s952 = sshll.u32 [#allocation7], 4
      %s953 = int_to_ptr.vmem [resolvable:$true] %s952
      %s954 = sshll.u32 %s16, 4
      %s955 = int_to_ptr.hbm [resolvable:$true] %s954
      %957 = dma.vmem_to_hbm [thread:$0]  %s953, 32, %s955, [#allocation8]
    $region69: #{tpu_custom_call.1} parent=1 // pred_fallthru
      _
    // Predicated region
    $region70: #{tpu_custom_call.1} parent=1 // pred_check
      _
    $region71: #{tpu_custom_call.1} parent=1 // pred_check_branch
      %959 = sbr.rel (0) target = $region73
    $region72: #{tpu_custom_call.1} parent=1 // pred_region
      %961 = dma.done [#allocation6], 32
    $region73: #{tpu_custom_call.1} parent=1 // pred_fallthru
      _
    // Predicated region
    $region74: #{tpu_custom_call.1} parent=1 // pred_check
      _
    $region75: #{tpu_custom_call.1} parent=1 // pred_check_branch
      %963 = sbr.rel (0) target = $region77
    $region76: #{tpu_custom_call.1} parent=1 // pred_region
      %965 = dma.done [#allocation8], 32
    $region77: #{tpu_custom_call.1} parent=1 // pred_fallthru
      _
    %966 = vsyncpa [#allocation6], 1
    %967 = vsyncpa [#allocation8], 1

</llo_original>
